<compile_context>
chip_gen: v5e
topology: v5e:2x2
jax: 0.10.0
libtpu: 0.0.40
codegen_flags: <defaults>
</compile_context>

<pallas_src>
import functools

import jax
import jax.numpy as jnp
import numpy as np
from jax.experimental import pallas as pl
from jax.experimental.pallas import tpu as pltpu


def _layer_norm(v, w, b, eps=1e-6):
    mu = jnp.mean(v, axis=-1, keepdims=True)
    var = jnp.mean(jnp.square(v - mu), axis=-1, keepdims=True)
    return (v - mu) * jax.lax.rsqrt(var + eps) * w + b


# ---------------------------------------------------------------------------
# Attention half: y = x + gamma1 * (proj(Attn(LN1(x))) + proj_b)
# ---------------------------------------------------------------------------
def _attn_core(x_q, hn_q, hn_kv, qw_ref, kvw_ref, projw_ref, projb_ref, g1_ref,
               out_ref, q_scr, kv_scr, oslab, *, num_heads, head_dim):
    C = num_heads * head_dim

    # Q for this query tile (scale already folded into qw). bf16 cast happens ONCE,
    # right after the matmul; the slab lives in VMEM scratch and is sliced per head.
    q_scr[...] = jnp.dot(hn_q, qw_ref[...],
                         preferred_element_type=jnp.float32).astype(jnp.bfloat16)
    # K,V for the FULL sequence (softmax is global), bf16, one VMEM slab.
    kv_scr[...] = jnp.dot(hn_kv, kvw_ref[...],
                          preferred_element_type=jnp.float32).astype(jnp.bfloat16)

    # Per-head attention.  Each head's output goes into its column slice of `oslab`,
    # so no f32 accumulator is carried across heads and the per-head temporaries
    # (q/k/v/s/p/o) die at the store.  One fused projection matmul follows the loop.
    for h in range(num_heads):
        lo = h * head_dim
        q = q_scr[:, lo:lo + head_dim]                         # (Tq, D) bf16
        k = kv_scr[:, lo:lo + head_dim]                        # (N,  D) bf16
        v = kv_scr[:, C + lo:C + lo + head_dim]                # (N,  D) bf16
        s = jax.lax.dot_general(q, k, (((1,), (1,)), ((), ())),
                                preferred_element_type=jnp.float32)   # (Tq, N) = q@k^T
        s = s - jnp.max(s, axis=-1, keepdims=True)
        e = jnp.exp(s)
        p = (e * pl.reciprocal(jnp.sum(e, axis=-1, keepdims=True), approx=True)
             ).astype(jnp.bfloat16)
        o = jnp.dot(p, v, preferred_element_type=jnp.float32)          # (Tq, D)
        oslab[:, lo:lo + head_dim] = o.astype(jnp.bfloat16)

    # One (Tq, C) @ (C, C) projection: full MXU contraction depth (K = C, not head_dim).
    attn = jnp.dot(oslab[...], projw_ref[...],
                   preferred_element_type=jnp.float32) + projb_ref[0]
    out_ref[0] = (x_q + attn * g1_ref[0]).astype(out_ref.dtype)


def _attn_kernel_whole_seq(x_ref, n1w_ref, n1b_ref, qw_ref, kvw_ref, projw_ref,
                           projb_ref, g1_ref, out_ref, q_scr, kv_scr, oslab,
                           *, num_heads, head_dim):
    x = x_ref[0]                                                        # (N, C)
    hn = _layer_norm(x, n1w_ref[0], n1b_ref[0]).astype(jnp.bfloat16)
    _attn_core(x, hn, hn, qw_ref, kvw_ref, projw_ref, projb_ref, g1_ref,
               out_ref, q_scr, kv_scr, oslab, num_heads=num_heads, head_dim=head_dim)


def _attn_kernel_q_tiled(xq_ref, xkv_ref, n1w_ref, n1b_ref, qw_ref, kvw_ref,
                         projw_ref, projb_ref, g1_ref, out_ref, q_scr, kv_scr, oslab,
                         *, num_heads, head_dim):
    # Query-tiled path (used when B == 1 so v7x's second TensorCore gets work).
    # The full-sequence x block has a constant block index, so it stays resident;
    # K/V are recomputed per query tile (nq is capped at 2, so the overhead is small).
    xq = xq_ref[0]                                                      # (Tq, C)
    hn_q = _layer_norm(xq, n1w_ref[0], n1b_ref[0]).astype(jnp.bfloat16)
    hn_kv = _layer_norm(xkv_ref[0], n1w_ref[0], n1b_ref[0]).astype(jnp.bfloat16)
    _attn_core(xq, hn_q, hn_kv, qw_ref, kvw_ref, projw_ref, projb_ref, g1_ref,
               out_ref, q_scr, kv_scr, oslab, num_heads=num_heads, head_dim=head_dim)


# ---------------------------------------------------------------------------
# MLP half: out = y + gamma2 * (fc2(GELU(fc1(LN2(y)) + b1)) + b2)   (sequence-tiled)
# ---------------------------------------------------------------------------
def _mlp_half_kernel(x_ref, n2w_ref, n2b_ref, fc1w_ref, fc1b_ref,
                     fc2w_ref, fc2b_ref, g2_ref, out_ref):
    x = x_ref[0]                                                        # (T, C) f32
    h = _layer_norm(x, n2w_ref[0], n2b_ref[0]).astype(jnp.bfloat16)
    h = jnp.dot(h, fc1w_ref[...], preferred_element_type=jnp.float32) + fc1b_ref[0]
    # exact-erf GELU matches torch nn.GELU(); approximate=True (tanh on EUP) is a valid
    # VALU-relief option on v5e if tolerance allows.
    h = jax.nn.gelu(h, approximate=False).astype(jnp.bfloat16)
    h = jnp.dot(h, fc2w_ref[...], preferred_element_type=jnp.float32) + fc2b_ref[0]
    out_ref[0] = (x + h * g2_ref[0]).astype(out_ref.dtype)


# ---------------------------------------------------------------------------
# Wrapper
# ---------------------------------------------------------------------------
def _const_spec(arr, buffered_weights):
    """Full-array BlockSpec with a constant block index (weights)."""
    nd = arr.ndim
    idx = lambda *_, _nd=nd: (0,) * _nd
    if buffered_weights and hasattr(pl, "Buffered"):
        # Weights never change block index -> single-buffer them (saves half of the
        # weight VMEM residency, the big v7x lever).
        return pl.BlockSpec(arr.shape, idx, pipeline_mode=pl.Buffered(1))
    return pl.BlockSpec(arr.shape, idx)


def _vmem_limit_bytes(weight_arrays, act_bytes, buffered_weights):
    w = sum(int(a.size) * a.dtype.itemsize for a in weight_arrays)
    w *= 1 if buffered_weights else 2
    total = w + int(act_bytes) + (8 << 20)          # headroom for compiler temporaries
    # Cap at 48 MiB: leaves headroom in v7x's 64 MiB per-core VMEM; plenty on v5e/v6e.
    return int(min(max(total, 8 << 20), 48 << 20))


def _pick_seq_tile(n):
    # 256 (not 512): keeps the MLP tile's f32 intermediates inside v7x VMEM.
    for t in (256, 128, 64, 32, 16, 8):
        if n % t == 0:
            return t
    return n   # e.g. N = 197 (cls token): block spans the full axis -> always legal


def _pick_q_tiles(batch, n):
    # Only split queries when the batch alone cannot feed both v7x TensorCores.
    if batch >= 2:
        return 1
    if n % 2 == 0 and (n // 2) % 8 == 0:
        return 2
    return 1


def _build_and_run(x, params, num_heads, seq_tile, buffered_weights):
    B, N, C = x.shape
    head_dim = C // num_heads
    scale = head_dim ** (-0.5)
    hidden = params["fc1_wt"].shape[1]

    # ---- weight prep: fold scale into Q columns, split Q / KV, bf16 matmul weights
    qkv_wt = params["qkv_wt"]
    q_wt = (qkv_wt[:, :C] * scale).astype(jnp.bfloat16)        # (C, C)
    kv_wt = qkv_wt[:, C:].astype(jnp.bfloat16)                 # (C, 2C)
    proj_wt = params["proj_wt"].astype(jnp.bfloat16)           # (C, C)
    fc1_wt = params["fc1_wt"].astype(jnp.bfloat16)             # (C, hidden)
    fc2_wt = params["fc2_wt"].astype(jnp.bfloat16)             # (hidden, C)

    # ---------------- attention half ----------------
    nq = _pick_q_tiles(B, N)
    tq = N // nq
    attn_weights = [params["n1_w"], params["n1_b"], q_wt, kv_wt, proj_wt,
                    params["proj_b"], params["gamma1"]]
    attn_scratch = [pltpu.VMEM((tq, C), jnp.bfloat16),          # Q slab
                    pltpu.VMEM((N, 2 * C), jnp.bfloat16),       # K,V slab
                    pltpu.VMEM((tq, C), jnp.bfloat16)]          # per-head output slab
    attn_act_bytes = (4 * tq * C * 4 + 2 * N * C * 4
                      + (2 * tq * C + 2 * N * C) * 2
                      + 6 * tq * max(N, C) * 4)
    wspecs = [_const_spec(a, buffered_weights) for a in attn_weights]
    attn_vmem = _vmem_limit_bytes(attn_weights, attn_act_bytes, buffered_weights)

    if nq == 1:
        attn_fn = pl.pallas_call(
            functools.partial(_attn_kernel_whole_seq,
                              num_heads=num_heads, head_dim=head_dim),
            out_shape=jax.ShapeDtypeStruct((B, N, C), x.dtype),
            grid_spec=pltpu.PrefetchScalarGridSpec(
                num_scalar_prefetch=0, grid=(B,),
                in_specs=[pl.BlockSpec((1, N, C), lambda b: (b, 0, 0))] + wspecs,
                out_specs=pl.BlockSpec((1, N, C), lambda b: (b, 0, 0)),
                scratch_shapes=attn_scratch),
            compiler_params=pltpu.CompilerParams(
                dimension_semantics=("parallel",), vmem_limit_bytes=attn_vmem))
        y = attn_fn(x, *attn_weights)
    else:
        attn_fn = pl.pallas_call(
            functools.partial(_attn_kernel_q_tiled,
                              num_heads=num_heads, head_dim=head_dim),
            out_shape=jax.ShapeDtypeStruct((B, N, C), x.dtype),
            grid_spec=pltpu.PrefetchScalarGridSpec(
                num_scalar_prefetch=0, grid=(B, nq),
                in_specs=[pl.BlockSpec((1, tq, C), lambda b, t: (b, t, 0)),
                          pl.BlockSpec((1, N, C), lambda b, t: (b, 0, 0))] + wspecs,
                out_specs=pl.BlockSpec((1, tq, C), lambda b, t: (b, t, 0)),
                scratch_shapes=attn_scratch),
            compiler_params=pltpu.CompilerParams(
                dimension_semantics=("parallel", "parallel"),
                vmem_limit_bytes=attn_vmem))
        y = attn_fn(x, x, *attn_weights)

    # ---------------- MLP half: grid over (batch, sequence tiles) ----------------
    if seq_tile is None:
        seq_tile = _pick_seq_tile(N)
    assert N % seq_tile == 0, "seq_tile must divide N"
    nt = N // seq_tile

    mlp_weights = [params["n2_w"], params["n2_b"], fc1_wt, params["fc1_b"],
                   fc2_wt, params["fc2_b"], params["gamma2"]]
    mlp_act_bytes = 4 * seq_tile * C * 4 + 4 * seq_tile * hidden * 4
    mlp_fn = pl.pallas_call(
        _mlp_half_kernel,
        out_shape=jax.ShapeDtypeStruct((B, N, C), x.dtype),
        grid_spec=pltpu.PrefetchScalarGridSpec(
            num_scalar_prefetch=0, grid=(B, nt),
            in_specs=[pl.BlockSpec((1, seq_tile, C), lambda b, t: (b, t, 0))]
                     + [_const_spec(a, buffered_weights) for a in mlp_weights],
            out_specs=pl.BlockSpec((1, seq_tile, C), lambda b, t: (b, t, 0))),
        compiler_params=pltpu.CompilerParams(
            dimension_semantics=("parallel", "parallel"),
            vmem_limit_bytes=_vmem_limit_bytes(mlp_weights, mlp_act_bytes,
                                               buffered_weights)))
    return mlp_fn(y, *mlp_weights)


def vit_block(x, params, num_heads, *, seq_tile=None):
    # Prefer single-buffered weight blocks (pl.Buffered(1)); if this jax version does
    # not support pipeline_mode on BlockSpec, transparently fall back to default
    # (double-buffered) weight blocks.  Semantics are identical either way.
    try:
        return _build_and_run(x, params, num_heads, seq_tile, buffered_weights=True)
    except Exception:
        return _build_and_run(x, params, num_heads, seq_tile, buffered_weights=False)


# ---------------------------------------------------------------------------
# Pure-JAX reference mirroring the PyTorch forward exactly (f32 throughout).
# ---------------------------------------------------------------------------
def ref_block(x, params, num_heads):
    B, N, C = x.shape
    D = C // num_heads
    scale = D ** (-0.5)

    def ln(v, w, b):
        mu = v.mean(-1, keepdims=True)
        var = ((v - mu) ** 2).mean(-1, keepdims=True)
        return (v - mu) / jnp.sqrt(var + 1e-6) * w[0] + b[0]

    # attention
    h = ln(x, params["n1_w"], params["n1_b"])
    qkv = h @ params["qkv_wt"]                                    # (B, N, 3C)
    qkv = qkv.reshape(B, N, 3, num_heads, D).transpose(2, 0, 3, 1, 4)
    q, k, v = qkv[0] * scale, qkv[1], qkv[2]                      # (B, H, N, D)
    attn = jax.nn.softmax(q @ jnp.swapaxes(k, -2, -1), axis=-1)
    a = (attn @ v).transpose(0, 2, 1, 3).reshape(B, N, C)
    a = a @ params["proj_wt"] + params["proj_b"][0]
    x = x + a * params["gamma1"][0]

    # mlp
    h = ln(x, params["n2_w"], params["n2_b"])
    h = h @ params["fc1_wt"] + params["fc1_b"][0]
    h = jax.nn.gelu(h, approximate=False)
    h = h @ params["fc2_wt"] + params["fc2_b"][0]
    return x + h * params["gamma2"][0]


def init_params(key, dim, num_heads, mlp_ratio=4.0):
    hidden = int(dim * mlp_ratio)
    ks = jax.random.split(key, 10)
    std = 0.02
    # All linear weights stored pre-transposed: F.linear(x, W) == x @ W.T.
    return {
        "n1_w":   jnp.ones((1, dim), jnp.float32),
        "n1_b":   jnp.zeros((1, dim), jnp.float32),
        "qkv_wt": std * jax.random.normal(ks[0], (dim, 3 * dim), jnp.float32),
        "proj_wt": std * jax.random.normal(ks[1], (dim, dim), jnp.float32),
        "proj_b": std * jax.random.normal(ks[2], (1, dim), jnp.float32),
        # LayerScale init is 1e-5 in the module; O(1) random gammas make the
        # correctness check actually exercise both residual branches.
        "gamma1": 1.0 + 0.1 * jax.random.normal(ks[7], (1, dim), jnp.float32),
        "n2_w":   jnp.ones((1, dim), jnp.float32),
        "n2_b":   jnp.zeros((1, dim), jnp.float32),
        "fc1_wt": std * jax.random.normal(ks[3], (dim, hidden), jnp.float32),
        "fc1_b":  std * jax.random.normal(ks[4], (1, hidden), jnp.float32),
        "fc2_wt": std * jax.random.normal(ks[5], (hidden, dim), jnp.float32),
        "fc2_b":  std * jax.random.normal(ks[6], (1, dim), jnp.float32),
        "gamma2": 1.0 + 0.1 * jax.random.normal(ks[8], (1, dim), jnp.float32),
    }


if __name__ == "__main__":
    B, N, C = 2, 16, 64
    num_heads = 4

    key = jax.random.PRNGKey(0)
    kx, kp = jax.random.split(key)
    x = jax.random.normal(kx, (B, N, C), jnp.float32)
    params = init_params(kp, C, num_heads)

    # B >= 2 path: grid=(B,) attention, sequence-tiled MLP.
    out = jax.block_until_ready(vit_block(x, params, num_heads, seq_tile=8))
    ref = jax.block_until_ready(ref_block(x, params, num_heads))
    # bf16 matmul operands + approx reciprocal => relaxed tolerance vs f32 reference.
    np.testing.assert_allclose(np.asarray(out), np.asarray(ref), atol=1e-2, rtol=1e-2)

    # B == 1 path: query-tiled attention (second parallel axis for v7x megacore).
    x1 = x[:1]
    out1 = jax.block_until_ready(vit_block(x1, params, num_heads, seq_tile=8))
    ref1 = jax.block_until_ready(ref_block(x1, params, num_heads))
    np.testing.assert_allclose(np.asarray(out1), np.asarray(ref1), atol=1e-2, rtol=1e-2)

    print("KERNEL_OK")
</pallas_src>

<mosaic_0001>
module attributes {stable_mosaic.version = 11 : i64} {
  func.func @_attn_kernel_whole_seq(%arg0: i32, %arg1: memref<1x16x64xf32, #tpu.memory_space<vmem>>, %arg2: memref<1x64xf32, #tpu.memory_space<vmem>>, %arg3: memref<1x64xf32, #tpu.memory_space<vmem>>, %arg4: memref<64x64xbf16, #tpu.memory_space<vmem>>, %arg5: memref<64x128xbf16, #tpu.memory_space<vmem>>, %arg6: memref<64x64xbf16, #tpu.memory_space<vmem>>, %arg7: memref<1x64xf32, #tpu.memory_space<vmem>>, %arg8: memref<1x64xf32, #tpu.memory_space<vmem>>, %arg9: memref<1x16x64xf32, #tpu.memory_space<vmem>>, %arg10: memref<16x64xbf16, #tpu.memory_space<vmem>>, %arg11: memref<16x128xbf16, #tpu.memory_space<vmem>>, %arg12: memref<16x64xbf16, #tpu.memory_space<vmem>>) attributes {dimension_semantics = [#tpu.dimension_semantics<parallel>], iteration_bounds = array<i64: 2>, scalar_prefetch = 0 : i64, scratch_operands = 3 : i64, tpu.core_type = #tpu.core_type<tc>, window_params = [{transform_indices = @transform_0, window_bounds = array<i64: 1, 16, 64>}, {pipeline_mode = #tpu.pipeline_mode<synchronous>, transform_indices = @transform_1, window_bounds = array<i64: 1, 64>}, {pipeline_mode = #tpu.pipeline_mode<synchronous>, transform_indices = @transform_2, window_bounds = array<i64: 1, 64>}, {pipeline_mode = #tpu.pipeline_mode<synchronous>, transform_indices = @transform_3, window_bounds = array<i64: 64, 64>}, {pipeline_mode = #tpu.pipeline_mode<synchronous>, transform_indices = @transform_4, window_bounds = array<i64: 64, 128>}, {pipeline_mode = #tpu.pipeline_mode<synchronous>, transform_indices = @transform_5, window_bounds = array<i64: 64, 64>}, {pipeline_mode = #tpu.pipeline_mode<synchronous>, transform_indices = @transform_6, window_bounds = array<i64: 1, 64>}, {pipeline_mode = #tpu.pipeline_mode<synchronous>, transform_indices = @transform_7, window_bounds = array<i64: 1, 64>}, {transform_indices = @transform_8, window_bounds = array<i64: 1, 16, 64>}]} {
    %c0 = arith.constant 0 : index
    %c0_0 = arith.constant 0 : index
    %c0_1 = arith.constant 0 : index
    %0 = vector.load %arg1[%c0, %c0_0, %c0_1] : memref<1x16x64xf32, #tpu.memory_space<vmem>>, vector<1x16x64xf32>
    %1 = vector.shape_cast %0 : vector<1x16x64xf32> to vector<16x64xf32>
    %c0_2 = arith.constant 0 : index
    %c0_3 = arith.constant 0 : index
    %2 = vector.load %arg2[%c0_2, %c0_3] : memref<1x64xf32, #tpu.memory_space<vmem>>, vector<1x64xf32>
    %3 = vector.shape_cast %2 : vector<1x64xf32> to vector<64xf32>
    %c0_4 = arith.constant 0 : index
    %c0_5 = arith.constant 0 : index
    %4 = vector.load %arg3[%c0_4, %c0_5] : memref<1x64xf32, #tpu.memory_space<vmem>>, vector<1x64xf32>
    %5 = vector.shape_cast %4 : vector<1x64xf32> to vector<64xf32>
    %cst = arith.constant dense<0.000000e+00> : vector<16xf32>
    %6 = vector.multi_reduction <add>, %1, %cst [1] : vector<16x64xf32> to vector<16xf32>
    %7 = vector.shape_cast %6 : vector<16xf32> to vector<16x1xf32>
    %cst_6 = arith.constant 6.400000e+01 : f32
    %8 = vector.broadcast %cst_6 : f32 to vector<16x1xf32>
    %9 = arith.divf %7, %8 : vector<16x1xf32>
    %10 = vector.broadcast %9 : vector<16x1xf32> to vector<16x64xf32>
    %11 = arith.subf %1, %10 : vector<16x64xf32>
    %12 = arith.mulf %11, %11 : vector<16x64xf32>
    %cst_7 = arith.constant dense<0.000000e+00> : vector<16xf32>
    %13 = vector.multi_reduction <add>, %12, %cst_7 [1] : vector<16x64xf32> to vector<16xf32>
    %14 = vector.shape_cast %13 : vector<16xf32> to vector<16x1xf32>
    %cst_8 = arith.constant 6.400000e+01 : f32
    %15 = vector.broadcast %cst_8 : f32 to vector<16x1xf32>
    %16 = arith.divf %14, %15 : vector<16x1xf32>
    %17 = vector.broadcast %9 : vector<16x1xf32> to vector<16x64xf32>
    %18 = arith.subf %1, %17 : vector<16x64xf32>
    %cst_9 = arith.constant 9.99999997E-7 : f32
    %19 = vector.broadcast %cst_9 : f32 to vector<16x1xf32>
    %20 = arith.addf %16, %19 : vector<16x1xf32>
    %21 = math.rsqrt %20 : vector<16x1xf32>
    %22 = vector.broadcast %21 : vector<16x1xf32> to vector<16x64xf32>
    %23 = arith.mulf %18, %22 : vector<16x64xf32>
    %24 = vector.shape_cast %3 : vector<64xf32> to vector<1x64xf32>
    %25 = vector.broadcast %24 : vector<1x64xf32> to vector<16x64xf32>
    %26 = arith.mulf %23, %25 : vector<16x64xf32>
    %27 = vector.shape_cast %5 : vector<64xf32> to vector<1x64xf32>
    %28 = vector.broadcast %27 : vector<1x64xf32> to vector<16x64xf32>
    %29 = arith.addf %26, %28 : vector<16x64xf32>
    %30 = arith.truncf %29 : vector<16x64xf32> to vector<16x64xbf16>
    %c0_10 = arith.constant 0 : index
    %c0_11 = arith.constant 0 : index
    %31 = vector.load %arg4[%c0_10, %c0_11] : memref<64x64xbf16, #tpu.memory_space<vmem>>, vector<64x64xbf16>
    %cst_12 = arith.constant dense<0.000000e+00> : vector<16x64xf32>
    %32 = tpu.matmul %30, %31, %cst_12 {dimension_numbers = #tpu.dot_dimension_numbers<[1], [0], [0], [1], [0, 0, 1, 1], [], []>} : vector<16x64xbf16>, vector<64x64xbf16>, vector<16x64xf32> -> vector<16x64xf32>
    %33 = arith.truncf %32 : vector<16x64xf32> to vector<16x64xbf16>
    %c0_13 = arith.constant 0 : index
    %c0_14 = arith.constant 0 : index
    %34 = vector.load %arg10[%c0_13, %c0_14] : memref<16x64xbf16, #tpu.memory_space<vmem>>, vector<16x64xbf16>
    tpu.vector_store %arg10[%c0_13, %c0_14], %33 {strides = array<i32>} : memref<16x64xbf16, #tpu.memory_space<vmem>>, vector<16x64xbf16>,
    %c0_15 = arith.constant 0 : index
    %c0_16 = arith.constant 0 : index
    %35 = vector.load %arg5[%c0_15, %c0_16] : memref<64x128xbf16, #tpu.memory_space<vmem>>, vector<64x128xbf16>
    %cst_17 = arith.constant dense<0.000000e+00> : vector<16x128xf32>
    %36 = tpu.matmul %30, %35, %cst_17 {dimension_numbers = #tpu.dot_dimension_numbers<[1], [0], [0], [1], [0, 0, 1, 1], [], []>} : vector<16x64xbf16>, vector<64x128xbf16>, vector<16x128xf32> -> vector<16x128xf32>
    %37 = arith.truncf %36 : vector<16x128xf32> to vector<16x128xbf16>
    %c0_18 = arith.constant 0 : index
    %c0_19 = arith.constant 0 : index
    %38 = vector.load %arg11[%c0_18, %c0_19] : memref<16x128xbf16, #tpu.memory_space<vmem>>, vector<16x128xbf16>
    tpu.vector_store %arg11[%c0_18, %c0_19], %37 {strides = array<i32>} : memref<16x128xbf16, #tpu.memory_space<vmem>>, vector<16x128xbf16>,
    %c0_20 = arith.constant 0 : index
    %c0_21 = arith.constant 0 : index
    %39 = vector.load %arg10[%c0_20, %c0_21] : memref<16x64xbf16, #tpu.memory_space<vmem>>, vector<16x16xbf16>
    %c0_22 = arith.constant 0 : index
    %c0_23 = arith.constant 0 : index
    %40 = vector.load %arg11[%c0_22, %c0_23] : memref<16x128xbf16, #tpu.memory_space<vmem>>, vector<16x16xbf16>
    %c0_24 = arith.constant 0 : index
    %c64 = arith.constant 64 : index
    %41 = vector.load %arg11[%c0_24, %c64] : memref<16x128xbf16, #tpu.memory_space<vmem>>, vector<16x16xbf16>
    %cst_25 = arith.constant dense<0.000000e+00> : vector<16x16xf32>
    %42 = tpu.matmul %39, %40, %cst_25 {dimension_numbers = #tpu.dot_dimension_numbers<[1], [1], [0], [0], [0, 0, 1, 0], [], []>} : vector<16x16xbf16>, vector<16x16xbf16>, vector<16x16xf32> -> vector<16x16xf32>
    %cst_26 = arith.constant dense<0xFF800000> : vector<16xf32>
    %43 = vector.multi_reduction <maximumf>, %42, %cst_26 [1] : vector<16x16xf32> to vector<16xf32>
    %44 = vector.shape_cast %43 : vector<16xf32> to vector<16x1xf32>
    %45 = vector.broadcast %44 : vector<16x1xf32> to vector<16x16xf32>
    %46 = arith.subf %42, %45 : vector<16x16xf32>
    %47 = math.exp %46 : vector<16x16xf32>
    %cst_27 = arith.constant dense<0.000000e+00> : vector<16xf32>
    %48 = vector.multi_reduction <add>, %47, %cst_27 [1] : vector<16x16xf32> to vector<16xf32>
    %49 = vector.shape_cast %48 : vector<16xf32> to vector<16x1xf32>
    %50 = tpu.reciprocal %49 {approx = true} : vector<16x1xf32> -> vector<16x1xf32>
    %51 = vector.broadcast %50 : vector<16x1xf32> to vector<16x16xf32>
    %52 = arith.mulf %47, %51 : vector<16x16xf32>
    %53 = arith.truncf %52 : vector<16x16xf32> to vector<16x16xbf16>
    %cst_28 = arith.constant dense<0.000000e+00> : vector<16x16xf32>
    %54 = tpu.matmul %53, %41, %cst_28 {dimension_numbers = #tpu.dot_dimension_numbers<[1], [0], [0], [1], [0, 0, 1, 1], [], []>} : vector<16x16xbf16>, vector<16x16xbf16>, vector<16x16xf32> -> vector<16x16xf32>
    %55 = arith.truncf %54 : vector<16x16xf32> to vector<16x16xbf16>
    %c0_29 = arith.constant 0 : index
    %c0_30 = arith.constant 0 : index
    %56 = vector.load %arg12[%c0_29, %c0_30] : memref<16x64xbf16, #tpu.memory_space<vmem>>, vector<16x16xbf16>
    tpu.vector_store %arg12[%c0_29, %c0_30], %55 {strides = array<i32>} : memref<16x64xbf16, #tpu.memory_space<vmem>>, vector<16x16xbf16>,
    %c0_31 = arith.constant 0 : index
    %c16 = arith.constant 16 : index
    %57 = vector.load %arg10[%c0_31, %c16] : memref<16x64xbf16, #tpu.memory_space<vmem>>, vector<16x16xbf16>
    %c0_32 = arith.constant 0 : index
    %c16_33 = arith.constant 16 : index
    %58 = vector.load %arg11[%c0_32, %c16_33] : memref<16x128xbf16, #tpu.memory_space<vmem>>, vector<16x16xbf16>
    %c0_34 = arith.constant 0 : index
    %c80 = arith.constant 80 : index
    %59 = vector.load %arg11[%c0_34, %c80] : memref<16x128xbf16, #tpu.memory_space<vmem>>, vector<16x16xbf16>
    %cst_35 = arith.constant dense<0.000000e+00> : vector<16x16xf32>
    %60 = tpu.matmul %57, %58, %cst_35 {dimension_numbers = #tpu.dot_dimension_numbers<[1], [1], [0], [0], [0, 0, 1, 0], [], []>} : vector<16x16xbf16>, vector<16x16xbf16>, vector<16x16xf32> -> vector<16x16xf32>
    %cst_36 = arith.constant dense<0xFF800000> : vector<16xf32>
    %61 = vector.multi_reduction <maximumf>, %60, %cst_36 [1] : vector<16x16xf32> to vector<16xf32>
    %62 = vector.shape_cast %61 : vector<16xf32> to vector<16x1xf32>
    %63 = vector.broadcast %62 : vector<16x1xf32> to vector<16x16xf32>
    %64 = arith.subf %60, %63 : vector<16x16xf32>
    %65 = math.exp %64 : vector<16x16xf32>
    %cst_37 = arith.constant dense<0.000000e+00> : vector<16xf32>
    %66 = vector.multi_reduction <add>, %65, %cst_37 [1] : vector<16x16xf32> to vector<16xf32>
    %67 = vector.shape_cast %66 : vector<16xf32> to vector<16x1xf32>
    %68 = tpu.reciprocal %67 {approx = true} : vector<16x1xf32> -> vector<16x1xf32>
    %69 = vector.broadcast %68 : vector<16x1xf32> to vector<16x16xf32>
    %70 = arith.mulf %65, %69 : vector<16x16xf32>
    %71 = arith.truncf %70 : vector<16x16xf32> to vector<16x16xbf16>
    %cst_38 = arith.constant dense<0.000000e+00> : vector<16x16xf32>
    %72 = tpu.matmul %71, %59, %cst_38 {dimension_numbers = #tpu.dot_dimension_numbers<[1], [0], [0], [1], [0, 0, 1, 1], [], []>} : vector<16x16xbf16>, vector<16x16xbf16>, vector<16x16xf32> -> vector<16x16xf32>
    %73 = arith.truncf %72 : vector<16x16xf32> to vector<16x16xbf16>
    %c0_39 = arith.constant 0 : index
    %c16_40 = arith.constant 16 : index
    %74 = vector.load %arg12[%c0_39, %c16_40] : memref<16x64xbf16, #tpu.memory_space<vmem>>, vector<16x16xbf16>
    tpu.vector_store %arg12[%c0_39, %c16_40], %73 {strides = array<i32>} : memref<16x64xbf16, #tpu.memory_space<vmem>>, vector<16x16xbf16>,
    %c0_41 = arith.constant 0 : index
    %c32 = arith.constant 32 : index
    %75 = vector.load %arg10[%c0_41, %c32] : memref<16x64xbf16, #tpu.memory_space<vmem>>, vector<16x16xbf16>
    %c0_42 = arith.constant 0 : index
    %c32_43 = arith.constant 32 : index
    %76 = vector.load %arg11[%c0_42, %c32_43] : memref<16x128xbf16, #tpu.memory_space<vmem>>, vector<16x16xbf16>
    %c0_44 = arith.constant 0 : index
    %c96 = arith.constant 96 : index
    %77 = vector.load %arg11[%c0_44, %c96] : memref<16x128xbf16, #tpu.memory_space<vmem>>, vector<16x16xbf16>
    %cst_45 = arith.constant dense<0.000000e+00> : vector<16x16xf32>
    %78 = tpu.matmul %75, %76, %cst_45 {dimension_numbers = #tpu.dot_dimension_numbers<[1], [1], [0], [0], [0, 0, 1, 0], [], []>} : vector<16x16xbf16>, vector<16x16xbf16>, vector<16x16xf32> -> vector<16x16xf32>
    %cst_46 = arith.constant dense<0xFF800000> : vector<16xf32>
    %79 = vector.multi_reduction <maximumf>, %78, %cst_46 [1] : vector<16x16xf32> to vector<16xf32>
    %80 = vector.shape_cast %79 : vector<16xf32> to vector<16x1xf32>
    %81 = vector.broadcast %80 : vector<16x1xf32> to vector<16x16xf32>
    %82 = arith.subf %78, %81 : vector<16x16xf32>
    %83 = math.exp %82 : vector<16x16xf32>
    %cst_47 = arith.constant dense<0.000000e+00> : vector<16xf32>
    %84 = vector.multi_reduction <add>, %83, %cst_47 [1] : vector<16x16xf32> to vector<16xf32>
    %85 = vector.shape_cast %84 : vector<16xf32> to vector<16x1xf32>
    %86 = tpu.reciprocal %85 {approx = true} : vector<16x1xf32> -> vector<16x1xf32>
    %87 = vector.broadcast %86 : vector<16x1xf32> to vector<16x16xf32>
    %88 = arith.mulf %83, %87 : vector<16x16xf32>
    %89 = arith.truncf %88 : vector<16x16xf32> to vector<16x16xbf16>
    %cst_48 = arith.constant dense<0.000000e+00> : vector<16x16xf32>
    %90 = tpu.matmul %89, %77, %cst_48 {dimension_numbers = #tpu.dot_dimension_numbers<[1], [0], [0], [1], [0, 0, 1, 1], [], []>} : vector<16x16xbf16>, vector<16x16xbf16>, vector<16x16xf32> -> vector<16x16xf32>
    %91 = arith.truncf %90 : vector<16x16xf32> to vector<16x16xbf16>
    %c0_49 = arith.constant 0 : index
    %c32_50 = arith.constant 32 : index
    %92 = vector.load %arg12[%c0_49, %c32_50] : memref<16x64xbf16, #tpu.memory_space<vmem>>, vector<16x16xbf16>
    tpu.vector_store %arg12[%c0_49, %c32_50], %91 {strides = array<i32>} : memref<16x64xbf16, #tpu.memory_space<vmem>>, vector<16x16xbf16>,
    %c0_51 = arith.constant 0 : index
    %c48 = arith.constant 48 : index
    %93 = vector.load %arg10[%c0_51, %c48] : memref<16x64xbf16, #tpu.memory_space<vmem>>, vector<16x16xbf16>
    %c0_52 = arith.constant 0 : index
    %c48_53 = arith.constant 48 : index
    %94 = vector.load %arg11[%c0_52, %c48_53] : memref<16x128xbf16, #tpu.memory_space<vmem>>, vector<16x16xbf16>
    %c0_54 = arith.constant 0 : index
    %c112 = arith.constant 112 : index
    %95 = vector.load %arg11[%c0_54, %c112] : memref<16x128xbf16, #tpu.memory_space<vmem>>, vector<16x16xbf16>
    %cst_55 = arith.constant dense<0.000000e+00> : vector<16x16xf32>
    %96 = tpu.matmul %93, %94, %cst_55 {dimension_numbers = #tpu.dot_dimension_numbers<[1], [1], [0], [0], [0, 0, 1, 0], [], []>} : vector<16x16xbf16>, vector<16x16xbf16>, vector<16x16xf32> -> vector<16x16xf32>
    %cst_56 = arith.constant dense<0xFF800000> : vector<16xf32>
    %97 = vector.multi_reduction <maximumf>, %96, %cst_56 [1] : vector<16x16xf32> to vector<16xf32>
    %98 = vector.shape_cast %97 : vector<16xf32> to vector<16x1xf32>
    %99 = vector.broadcast %98 : vector<16x1xf32> to vector<16x16xf32>
    %100 = arith.subf %96, %99 : vector<16x16xf32>
    %101 = math.exp %100 : vector<16x16xf32>
    %cst_57 = arith.constant dense<0.000000e+00> : vector<16xf32>
    %102 = vector.multi_reduction <add>, %101, %cst_57 [1] : vector<16x16xf32> to vector<16xf32>
    %103 = vector.shape_cast %102 : vector<16xf32> to vector<16x1xf32>
    %104 = tpu.reciprocal %103 {approx = true} : vector<16x1xf32> -> vector<16x1xf32>
    %105 = vector.broadcast %104 : vector<16x1xf32> to vector<16x16xf32>
    %106 = arith.mulf %101, %105 : vector<16x16xf32>
    %107 = arith.truncf %106 : vector<16x16xf32> to vector<16x16xbf16>
    %cst_58 = arith.constant dense<0.000000e+00> : vector<16x16xf32>
    %108 = tpu.matmul %107, %95, %cst_58 {dimension_numbers = #tpu.dot_dimension_numbers<[1], [0], [0], [1], [0, 0, 1, 1], [], []>} : vector<16x16xbf16>, vector<16x16xbf16>, vector<16x16xf32> -> vector<16x16xf32>
    %109 = arith.truncf %108 : vector<16x16xf32> to vector<16x16xbf16>
    %c0_59 = arith.constant 0 : index
    %c48_60 = arith.constant 48 : index
    %110 = vector.load %arg12[%c0_59, %c48_60] : memref<16x64xbf16, #tpu.memory_space<vmem>>, vector<16x16xbf16>
    tpu.vector_store %arg12[%c0_59, %c48_60], %109 {strides = array<i32>} : memref<16x64xbf16, #tpu.memory_space<vmem>>, vector<16x16xbf16>,
    %c0_61 = arith.constant 0 : index
    %c0_62 = arith.constant 0 : index
    %111 = vector.load %arg12[%c0_61, %c0_62] : memref<16x64xbf16, #tpu.memory_space<vmem>>, vector<16x64xbf16>
    %c0_63 = arith.constant 0 : index
    %c0_64 = arith.constant 0 : index
    %112 = vector.load %arg6[%c0_63, %c0_64] : memref<64x64xbf16, #tpu.memory_space<vmem>>, vector<64x64xbf16>
    %cst_65 = arith.constant dense<0.000000e+00> : vector<16x64xf32>
    %113 = tpu.matmul %111, %112, %cst_65 {dimension_numbers = #tpu.dot_dimension_numbers<[1], [0], [0], [1], [0, 0, 1, 1], [], []>} : vector<16x64xbf16>, vector<64x64xbf16>, vector<16x64xf32> -> vector<16x64xf32>
    %c0_66 = arith.constant 0 : index
    %c0_67 = arith.constant 0 : index
    %114 = vector.load %arg7[%c0_66, %c0_67] : memref<1x64xf32, #tpu.memory_space<vmem>>, vector<1x64xf32>
    %115 = vector.shape_cast %114 : vector<1x64xf32> to vector<64xf32>
    %116 = vector.shape_cast %115 : vector<64xf32> to vector<1x64xf32>
    %117 = vector.broadcast %116 : vector<1x64xf32> to vector<16x64xf32>
    %118 = arith.addf %113, %117 : vector<16x64xf32>
    %c0_68 = arith.constant 0 : index
    %c0_69 = arith.constant 0 : index
    %119 = vector.load %arg8[%c0_68, %c0_69] : memref<1x64xf32, #tpu.memory_space<vmem>>, vector<1x64xf32>
    %120 = vector.shape_cast %119 : vector<1x64xf32> to vector<64xf32>
    %121 = vector.shape_cast %120 : vector<64xf32> to vector<1x64xf32>
    %122 = vector.broadcast %121 : vector<1x64xf32> to vector<16x64xf32>
    %123 = arith.mulf %118, %122 : vector<16x64xf32>
    %124 = arith.addf %1, %123 : vector<16x64xf32>
    %c0_70 = arith.constant 0 : index
    %c0_71 = arith.constant 0 : index
    %c0_72 = arith.constant 0 : index
    %125 = vector.load %arg9[%c0_70, %c0_71, %c0_72] : memref<1x16x64xf32, #tpu.memory_space<vmem>>, vector<1x16x64xf32>
    %126 = vector.shape_cast %125 : vector<1x16x64xf32> to vector<16x64xf32>
    %127 = vector.shape_cast %124 : vector<16x64xf32> to vector<1x16x64xf32>
    tpu.vector_store %arg9[%c0_70, %c0_71, %c0_72], %127 {strides = array<i32>} : memref<1x16x64xf32, #tpu.memory_space<vmem>>, vector<1x16x64xf32>,
    return
  }
  func.func @transform_0(%arg0: i32) -> (i32, i32, i32) {
    %c0_i32 = arith.constant 0 : i32
    %c0_i32_0 = arith.constant 0 : i32
    %c0_i32_1 = arith.constant 0 : i32
    return %arg0, %c0_i32, %c0_i32_0 : i32, i32, i32
  }
  func.func @transform_1(%arg0: i32) -> (i32, i32) {
    %c0_i32 = arith.constant 0 : i32
    %c0_i32_0 = arith.constant 0 : i32
    %c0_i32_1 = arith.constant 0 : i32
    return %c0_i32, %c0_i32_0 : i32, i32
  }
  func.func @transform_2(%arg0: i32) -> (i32, i32) {
    %c0_i32 = arith.constant 0 : i32
    %c0_i32_0 = arith.constant 0 : i32
    %c0_i32_1 = arith.constant 0 : i32
    return %c0_i32, %c0_i32_0 : i32, i32
  }
  func.func @transform_3(%arg0: i32) -> (i32, i32) {
    %c0_i32 = arith.constant 0 : i32
    %c0_i32_0 = arith.constant 0 : i32
    %c0_i32_1 = arith.constant 0 : i32
    return %c0_i32, %c0_i32_0 : i32, i32
  }
  func.func @transform_4(%arg0: i32) -> (i32, i32) {
    %c0_i32 = arith.constant 0 : i32
    %c0_i32_0 = arith.constant 0 : i32
    %c0_i32_1 = arith.constant 0 : i32
    return %c0_i32, %c0_i32_0 : i32, i32
  }
  func.func @transform_5(%arg0: i32) -> (i32, i32) {
    %c0_i32 = arith.constant 0 : i32
    %c0_i32_0 = arith.constant 0 : i32
    %c0_i32_1 = arith.constant 0 : i32
    return %c0_i32, %c0_i32_0 : i32, i32
  }
  func.func @transform_6(%arg0: i32) -> (i32, i32) {
    %c0_i32 = arith.constant 0 : i32
    %c0_i32_0 = arith.constant 0 : i32
    %c0_i32_1 = arith.constant 0 : i32
    return %c0_i32, %c0_i32_0 : i32, i32
  }
  func.func @transform_7(%arg0: i32) -> (i32, i32) {
    %c0_i32 = arith.constant 0 : i32
    %c0_i32_0 = arith.constant 0 : i32
    %c0_i32_1 = arith.constant 0 : i32
    return %c0_i32, %c0_i32_0 : i32, i32
  }
  func.func @transform_8(%arg0: i32) -> (i32, i32, i32) {
    %c0_i32 = arith.constant 0 : i32
    %c0_i32_0 = arith.constant 0 : i32
    %c0_i32_1 = arith.constant 0 : i32
    return %arg0, %c0_i32, %c0_i32_0 : i32, i32, i32
  }
}

module attributes {stable_mosaic.version = 11 : i64} {
  func.func @_attn_kernel_whole_seq(%arg0: i32, %arg1: memref<1x16x64xf32, #tpu.memory_space<vmem>>, %arg2: memref<1x64xf32, #tpu.memory_space<vmem>>, %arg3: memref<1x64xf32, #tpu.memory_space<vmem>>, %arg4: memref<64x64xbf16, #tpu.memory_space<vmem>>, %arg5: memref<64x128xbf16, #tpu.memory_space<vmem>>, %arg6: memref<64x64xbf16, #tpu.memory_space<vmem>>, %arg7: memref<1x64xf32, #tpu.memory_space<vmem>>, %arg8: memref<1x64xf32, #tpu.memory_space<vmem>>, %arg9: memref<1x16x64xf32, #tpu.memory_space<vmem>>, %arg10: memref<16x64xbf16, #tpu.memory_space<vmem>>, %arg11: memref<16x128xbf16, #tpu.memory_space<vmem>>, %arg12: memref<16x64xbf16, #tpu.memory_space<vmem>>) attributes {dimension_semantics = [#tpu.dimension_semantics<parallel>], iteration_bounds = array<i64: 2>, scalar_prefetch = 0 : i64, scratch_operands = 3 : i64, tpu.core_type = #tpu.core_type<tc>, window_params = [{transform_indices = @transform_0, window_bounds = array<i64: 1, 16, 64>}, {pipeline_mode = #tpu.pipeline_mode<synchronous>, transform_indices = @transform_1, window_bounds = array<i64: 1, 64>}, {pipeline_mode = #tpu.pipeline_mode<synchronous>, transform_indices = @transform_2, window_bounds = array<i64: 1, 64>}, {pipeline_mode = #tpu.pipeline_mode<synchronous>, transform_indices = @transform_3, window_bounds = array<i64: 64, 64>}, {pipeline_mode = #tpu.pipeline_mode<synchronous>, transform_indices = @transform_4, window_bounds = array<i64: 64, 128>}, {pipeline_mode = #tpu.pipeline_mode<synchronous>, transform_indices = @transform_5, window_bounds = array<i64: 64, 64>}, {pipeline_mode = #tpu.pipeline_mode<synchronous>, transform_indices = @transform_6, window_bounds = array<i64: 1, 64>}, {pipeline_mode = #tpu.pipeline_mode<synchronous>, transform_indices = @transform_7, window_bounds = array<i64: 1, 64>}, {transform_indices = @transform_8, window_bounds = array<i64: 1, 16, 64>}]} {
    %c0 = arith.constant 0 : index
    %c0_0 = arith.constant 0 : index
    %c0_1 = arith.constant 0 : index
    %0 = vector.load %arg1[%c0, %c0_0, %c0_1] : memref<1x16x64xf32, #tpu.memory_space<vmem>>, vector<1x16x64xf32>
    %1 = vector.shape_cast %0 : vector<1x16x64xf32> to vector<16x64xf32>
    %c0_2 = arith.constant 0 : index
    %c0_3 = arith.constant 0 : index
    %2 = vector.load %arg2[%c0_2, %c0_3] : memref<1x64xf32, #tpu.memory_space<vmem>>, vector<1x64xf32>
    %3 = vector.shape_cast %2 : vector<1x64xf32> to vector<64xf32>
    %c0_4 = arith.constant 0 : index
    %c0_5 = arith.constant 0 : index
    %4 = vector.load %arg3[%c0_4, %c0_5] : memref<1x64xf32, #tpu.memory_space<vmem>>, vector<1x64xf32>
    %5 = vector.shape_cast %4 : vector<1x64xf32> to vector<64xf32>
    %cst = arith.constant dense<0.000000e+00> : vector<16xf32>
    %6 = vector.multi_reduction <add>, %1, %cst [1] : vector<16x64xf32> to vector<16xf32>
    %7 = vector.shape_cast %6 : vector<16xf32> to vector<16x1xf32>
    %cst_6 = arith.constant 6.400000e+01 : f32
    %8 = vector.broadcast %cst_6 : f32 to vector<16x1xf32>
    %9 = arith.divf %7, %8 : vector<16x1xf32>
    %10 = vector.broadcast %9 : vector<16x1xf32> to vector<16x64xf32>
    %11 = arith.subf %1, %10 : vector<16x64xf32>
    %12 = arith.mulf %11, %11 : vector<16x64xf32>
    %cst_7 = arith.constant dense<0.000000e+00> : vector<16xf32>
    %13 = vector.multi_reduction <add>, %12, %cst_7 [1] : vector<16x64xf32> to vector<16xf32>
    %14 = vector.shape_cast %13 : vector<16xf32> to vector<16x1xf32>
    %cst_8 = arith.constant 6.400000e+01 : f32
    %15 = vector.broadcast %cst_8 : f32 to vector<16x1xf32>
    %16 = arith.divf %14, %15 : vector<16x1xf32>
    %17 = vector.broadcast %9 : vector<16x1xf32> to vector<16x64xf32>
    %18 = arith.subf %1, %17 : vector<16x64xf32>
    %cst_9 = arith.constant 9.99999997E-7 : f32
    %19 = vector.broadcast %cst_9 : f32 to vector<16x1xf32>
    %20 = arith.addf %16, %19 : vector<16x1xf32>
    %21 = math.rsqrt %20 : vector<16x1xf32>
    %22 = vector.broadcast %21 : vector<16x1xf32> to vector<16x64xf32>
    %23 = arith.mulf %18, %22 : vector<16x64xf32>
    %24 = vector.shape_cast %3 : vector<64xf32> to vector<1x64xf32>
    %25 = vector.broadcast %24 : vector<1x64xf32> to vector<16x64xf32>
    %26 = arith.mulf %23, %25 : vector<16x64xf32>
    %27 = vector.shape_cast %5 : vector<64xf32> to vector<1x64xf32>
    %28 = vector.broadcast %27 : vector<1x64xf32> to vector<16x64xf32>
    %29 = arith.addf %26, %28 : vector<16x64xf32>
    %30 = arith.truncf %29 : vector<16x64xf32> to vector<16x64xbf16>
    %c0_10 = arith.constant 0 : index
    %c0_11 = arith.constant 0 : index
    %31 = vector.load %arg4[%c0_10, %c0_11] : memref<64x64xbf16, #tpu.memory_space<vmem>>, vector<64x64xbf16>
    %cst_12 = arith.constant dense<0.000000e+00> : vector<16x64xf32>
    %32 = tpu.matmul %30, %31, %cst_12 {dimension_numbers = #tpu.dot_dimension_numbers<[1], [0], [0], [1], [0, 0, 1, 1], [], []>} : vector<16x64xbf16>, vector<64x64xbf16>, vector<16x64xf32> -> vector<16x64xf32>
    %33 = arith.truncf %32 : vector<16x64xf32> to vector<16x64xbf16>
    %c0_13 = arith.constant 0 : index
    %c0_14 = arith.constant 0 : index
    %34 = vector.load %arg10[%c0_13, %c0_14] : memref<16x64xbf16, #tpu.memory_space<vmem>>, vector<16x64xbf16>
    tpu.vector_store %arg10[%c0_13, %c0_14], %33 {strides = array<i32>} : memref<16x64xbf16, #tpu.memory_space<vmem>>, vector<16x64xbf16>,
    %c0_15 = arith.constant 0 : index
    %c0_16 = arith.constant 0 : index
    %35 = vector.load %arg5[%c0_15, %c0_16] : memref<64x128xbf16, #tpu.memory_space<vmem>>, vector<64x128xbf16>
    %cst_17 = arith.constant dense<0.000000e+00> : vector<16x128xf32>
    %36 = tpu.matmul %30, %35, %cst_17 {dimension_numbers = #tpu.dot_dimension_numbers<[1], [0], [0], [1], [0, 0, 1, 1], [], []>} : vector<16x64xbf16>, vector<64x128xbf16>, vector<16x128xf32> -> vector<16x128xf32>
    %37 = arith.truncf %36 : vector<16x128xf32> to vector<16x128xbf16>
    %c0_18 = arith.constant 0 : index
    %c0_19 = arith.constant 0 : index
    %38 = vector.load %arg11[%c0_18, %c0_19] : memref<16x128xbf16, #tpu.memory_space<vmem>>, vector<16x128xbf16>
    tpu.vector_store %arg11[%c0_18, %c0_19], %37 {strides = array<i32>} : memref<16x128xbf16, #tpu.memory_space<vmem>>, vector<16x128xbf16>,
    %c0_20 = arith.constant 0 : index
    %c0_21 = arith.constant 0 : index
    %39 = vector.load %arg10[%c0_20, %c0_21] : memref<16x64xbf16, #tpu.memory_space<vmem>>, vector<16x16xbf16>
    %c0_22 = arith.constant 0 : index
    %c0_23 = arith.constant 0 : index
    %40 = vector.load %arg11[%c0_22, %c0_23] : memref<16x128xbf16, #tpu.memory_space<vmem>>, vector<16x16xbf16>
    %c0_24 = arith.constant 0 : index
    %c64 = arith.constant 64 : index
    %41 = vector.load %arg11[%c0_24, %c64] : memref<16x128xbf16, #tpu.memory_space<vmem>>, vector<16x16xbf16>
    %cst_25 = arith.constant dense<0.000000e+00> : vector<16x16xf32>
    %42 = tpu.matmul %39, %40, %cst_25 {dimension_numbers = #tpu.dot_dimension_numbers<[1], [1], [0], [0], [0, 0, 1, 0], [], []>} : vector<16x16xbf16>, vector<16x16xbf16>, vector<16x16xf32> -> vector<16x16xf32>
    %cst_26 = arith.constant dense<0xFF800000> : vector<16xf32>
    %43 = vector.multi_reduction <maximumf>, %42, %cst_26 [1] : vector<16x16xf32> to vector<16xf32>
    %44 = vector.shape_cast %43 : vector<16xf32> to vector<16x1xf32>
    %45 = vector.broadcast %44 : vector<16x1xf32> to vector<16x16xf32>
    %46 = arith.subf %42, %45 : vector<16x16xf32>
    %47 = math.exp %46 : vector<16x16xf32>
    %cst_27 = arith.constant dense<0.000000e+00> : vector<16xf32>
    %48 = vector.multi_reduction <add>, %47, %cst_27 [1] : vector<16x16xf32> to vector<16xf32>
    %49 = vector.shape_cast %48 : vector<16xf32> to vector<16x1xf32>
    %50 = tpu.reciprocal %49 {approx = true} : vector<16x1xf32> -> vector<16x1xf32>
    %51 = vector.broadcast %50 : vector<16x1xf32> to vector<16x16xf32>
    %52 = arith.mulf %47, %51 : vector<16x16xf32>
    %53 = arith.truncf %52 : vector<16x16xf32> to vector<16x16xbf16>
    %cst_28 = arith.constant dense<0.000000e+00> : vector<16x16xf32>
    %54 = tpu.matmul %53, %41, %cst_28 {dimension_numbers = #tpu.dot_dimension_numbers<[1], [0], [0], [1], [0, 0, 1, 1], [], []>} : vector<16x16xbf16>, vector<16x16xbf16>, vector<16x16xf32> -> vector<16x16xf32>
    %55 = arith.truncf %54 : vector<16x16xf32> to vector<16x16xbf16>
    %c0_29 = arith.constant 0 : index
    %c0_30 = arith.constant 0 : index
    %56 = vector.load %arg12[%c0_29, %c0_30] : memref<16x64xbf16, #tpu.memory_space<vmem>>, vector<16x16xbf16>
    tpu.vector_store %arg12[%c0_29, %c0_30], %55 {strides = array<i32>} : memref<16x64xbf16, #tpu.memory_space<vmem>>, vector<16x16xbf16>,
    %c0_31 = arith.constant 0 : index
    %c16 = arith.constant 16 : index
    %57 = vector.load %arg10[%c0_31, %c16] : memref<16x64xbf16, #tpu.memory_space<vmem>>, vector<16x16xbf16>
    %c0_32 = arith.constant 0 : index
    %c16_33 = arith.constant 16 : index
    %58 = vector.load %arg11[%c0_32, %c16_33] : memref<16x128xbf16, #tpu.memory_space<vmem>>, vector<16x16xbf16>
    %c0_34 = arith.constant 0 : index
    %c80 = arith.constant 80 : index
    %59 = vector.load %arg11[%c0_34, %c80] : memref<16x128xbf16, #tpu.memory_space<vmem>>, vector<16x16xbf16>
    %cst_35 = arith.constant dense<0.000000e+00> : vector<16x16xf32>
    %60 = tpu.matmul %57, %58, %cst_35 {dimension_numbers = #tpu.dot_dimension_numbers<[1], [1], [0], [0], [0, 0, 1, 0], [], []>} : vector<16x16xbf16>, vector<16x16xbf16>, vector<16x16xf32> -> vector<16x16xf32>
    %cst_36 = arith.constant dense<0xFF800000> : vector<16xf32>
    %61 = vector.multi_reduction <maximumf>, %60, %cst_36 [1] : vector<16x16xf32> to vector<16xf32>
    %62 = vector.shape_cast %61 : vector<16xf32> to vector<16x1xf32>
    %63 = vector.broadcast %62 : vector<16x1xf32> to vector<16x16xf32>
    %64 = arith.subf %60, %63 : vector<16x16xf32>
    %65 = math.exp %64 : vector<16x16xf32>
    %cst_37 = arith.constant dense<0.000000e+00> : vector<16xf32>
    %66 = vector.multi_reduction <add>, %65, %cst_37 [1] : vector<16x16xf32> to vector<16xf32>
    %67 = vector.shape_cast %66 : vector<16xf32> to vector<16x1xf32>
    %68 = tpu.reciprocal %67 {approx = true} : vector<16x1xf32> -> vector<16x1xf32>
    %69 = vector.broadcast %68 : vector<16x1xf32> to vector<16x16xf32>
    %70 = arith.mulf %65, %69 : vector<16x16xf32>
    %71 = arith.truncf %70 : vector<16x16xf32> to vector<16x16xbf16>
    %cst_38 = arith.constant dense<0.000000e+00> : vector<16x16xf32>
    %72 = tpu.matmul %71, %59, %cst_38 {dimension_numbers = #tpu.dot_dimension_numbers<[1], [0], [0], [1], [0, 0, 1, 1], [], []>} : vector<16x16xbf16>, vector<16x16xbf16>, vector<16x16xf32> -> vector<16x16xf32>
    %73 = arith.truncf %72 : vector<16x16xf32> to vector<16x16xbf16>
    %c0_39 = arith.constant 0 : index
    %c16_40 = arith.constant 16 : index
    %74 = vector.load %arg12[%c0_39, %c16_40] : memref<16x64xbf16, #tpu.memory_space<vmem>>, vector<16x16xbf16>
    tpu.vector_store %arg12[%c0_39, %c16_40], %73 {strides = array<i32>} : memref<16x64xbf16, #tpu.memory_space<vmem>>, vector<16x16xbf16>,
    %c0_41 = arith.constant 0 : index
    %c32 = arith.constant 32 : index
    %75 = vector.load %arg10[%c0_41, %c32] : memref<16x64xbf16, #tpu.memory_space<vmem>>, vector<16x16xbf16>
    %c0_42 = arith.constant 0 : index
    %c32_43 = arith.constant 32 : index
    %76 = vector.load %arg11[%c0_42, %c32_43] : memref<16x128xbf16, #tpu.memory_space<vmem>>, vector<16x16xbf16>
    %c0_44 = arith.constant 0 : index
    %c96 = arith.constant 96 : index
    %77 = vector.load %arg11[%c0_44, %c96] : memref<16x128xbf16, #tpu.memory_space<vmem>>, vector<16x16xbf16>
    %cst_45 = arith.constant dense<0.000000e+00> : vector<16x16xf32>
    %78 = tpu.matmul %75, %76, %cst_45 {dimension_numbers = #tpu.dot_dimension_numbers<[1], [1], [0], [0], [0, 0, 1, 0], [], []>} : vector<16x16xbf16>, vector<16x16xbf16>, vector<16x16xf32> -> vector<16x16xf32>
    %cst_46 = arith.constant dense<0xFF800000> : vector<16xf32>
    %79 = vector.multi_reduction <maximumf>, %78, %cst_46 [1] : vector<16x16xf32> to vector<16xf32>
    %80 = vector.shape_cast %79 : vector<16xf32> to vector<16x1xf32>
    %81 = vector.broadcast %80 : vector<16x1xf32> to vector<16x16xf32>
    %82 = arith.subf %78, %81 : vector<16x16xf32>
    %83 = math.exp %82 : vector<16x16xf32>
    %cst_47 = arith.constant dense<0.000000e+00> : vector<16xf32>
    %84 = vector.multi_reduction <add>, %83, %cst_47 [1] : vector<16x16xf32> to vector<16xf32>
    %85 = vector.shape_cast %84 : vector<16xf32> to vector<16x1xf32>
    %86 = tpu.reciprocal %85 {approx = true} : vector<16x1xf32> -> vector<16x1xf32>
    %87 = vector.broadcast %86 : vector<16x1xf32> to vector<16x16xf32>
    %88 = arith.mulf %83, %87 : vector<16x16xf32>
    %89 = arith.truncf %88 : vector<16x16xf32> to vector<16x16xbf16>
    %cst_48 = arith.constant dense<0.000000e+00> : vector<16x16xf32>
    %90 = tpu.matmul %89, %77, %cst_48 {dimension_numbers = #tpu.dot_dimension_numbers<[1], [0], [0], [1], [0, 0, 1, 1], [], []>} : vector<16x16xbf16>, vector<16x16xbf16>, vector<16x16xf32> -> vector<16x16xf32>
    %91 = arith.truncf %90 : vector<16x16xf32> to vector<16x16xbf16>
    %c0_49 = arith.constant 0 : index
    %c32_50 = arith.constant 32 : index
    %92 = vector.load %arg12[%c0_49, %c32_50] : memref<16x64xbf16, #tpu.memory_space<vmem>>, vector<16x16xbf16>
    tpu.vector_store %arg12[%c0_49, %c32_50], %91 {strides = array<i32>} : memref<16x64xbf16, #tpu.memory_space<vmem>>, vector<16x16xbf16>,
    %c0_51 = arith.constant 0 : index
    %c48 = arith.constant 48 : index
    %93 = vector.load %arg10[%c0_51, %c48] : memref<16x64xbf16, #tpu.memory_space<vmem>>, vector<16x16xbf16>
    %c0_52 = arith.constant 0 : index
    %c48_53 = arith.constant 48 : index
    %94 = vector.load %arg11[%c0_52, %c48_53] : memref<16x128xbf16, #tpu.memory_space<vmem>>, vector<16x16xbf16>
    %c0_54 = arith.constant 0 : index
    %c112 = arith.constant 112 : index
    %95 = vector.load %arg11[%c0_54, %c112] : memref<16x128xbf16, #tpu.memory_space<vmem>>, vector<16x16xbf16>
    %cst_55 = arith.constant dense<0.000000e+00> : vector<16x16xf32>
    %96 = tpu.matmul %93, %94, %cst_55 {dimension_numbers = #tpu.dot_dimension_numbers<[1], [1], [0], [0], [0, 0, 1, 0], [], []>} : vector<16x16xbf16>, vector<16x16xbf16>, vector<16x16xf32> -> vector<16x16xf32>
    %cst_56 = arith.constant dense<0xFF800000> : vector<16xf32>
    %97 = vector.multi_reduction <maximumf>, %96, %cst_56 [1] : vector<16x16xf32> to vector<16xf32>
    %98 = vector.shape_cast %97 : vector<16xf32> to vector<16x1xf32>
    %99 = vector.broadcast %98 : vector<16x1xf32> to vector<16x16xf32>
    %100 = arith.subf %96, %99 : vector<16x16xf32>
    %101 = math.exp %100 : vector<16x16xf32>
    %cst_57 = arith.constant dense<0.000000e+00> : vector<16xf32>
    %102 = vector.multi_reduction <add>, %101, %cst_57 [1] : vector<16x16xf32> to vector<16xf32>
    %103 = vector.shape_cast %102 : vector<16xf32> to vector<16x1xf32>
    %104 = tpu.reciprocal %103 {approx = true} : vector<16x1xf32> -> vector<16x1xf32>
    %105 = vector.broadcast %104 : vector<16x1xf32> to vector<16x16xf32>
    %106 = arith.mulf %101, %105 : vector<16x16xf32>
    %107 = arith.truncf %106 : vector<16x16xf32> to vector<16x16xbf16>
    %cst_58 = arith.constant dense<0.000000e+00> : vector<16x16xf32>
    %108 = tpu.matmul %107, %95, %cst_58 {dimension_numbers = #tpu.dot_dimension_numbers<[1], [0], [0], [1], [0, 0, 1, 1], [], []>} : vector<16x16xbf16>, vector<16x16xbf16>, vector<16x16xf32> -> vector<16x16xf32>
    %109 = arith.truncf %108 : vector<16x16xf32> to vector<16x16xbf16>
    %c0_59 = arith.constant 0 : index
    %c48_60 = arith.constant 48 : index
    %110 = vector.load %arg12[%c0_59, %c48_60] : memref<16x64xbf16, #tpu.memory_space<vmem>>, vector<16x16xbf16>
    tpu.vector_store %arg12[%c0_59, %c48_60], %109 {strides = array<i32>} : memref<16x64xbf16, #tpu.memory_space<vmem>>, vector<16x16xbf16>,
    %c0_61 = arith.constant 0 : index
    %c0_62 = arith.constant 0 : index
    %111 = vector.load %arg12[%c0_61, %c0_62] : memref<16x64xbf16, #tpu.memory_space<vmem>>, vector<16x64xbf16>
    %c0_63 = arith.constant 0 : index
    %c0_64 = arith.constant 0 : index
    %112 = vector.load %arg6[%c0_63, %c0_64] : memref<64x64xbf16, #tpu.memory_space<vmem>>, vector<64x64xbf16>
    %cst_65 = arith.constant dense<0.000000e+00> : vector<16x64xf32>
    %113 = tpu.matmul %111, %112, %cst_65 {dimension_numbers = #tpu.dot_dimension_numbers<[1], [0], [0], [1], [0, 0, 1, 1], [], []>} : vector<16x64xbf16>, vector<64x64xbf16>, vector<16x64xf32> -> vector<16x64xf32>
    %c0_66 = arith.constant 0 : index
    %c0_67 = arith.constant 0 : index
    %114 = vector.load %arg7[%c0_66, %c0_67] : memref<1x64xf32, #tpu.memory_space<vmem>>, vector<1x64xf32>
    %115 = vector.shape_cast %114 : vector<1x64xf32> to vector<64xf32>
    %116 = vector.shape_cast %115 : vector<64xf32> to vector<1x64xf32>
    %117 = vector.broadcast %116 : vector<1x64xf32> to vector<16x64xf32>
    %118 = arith.addf %113, %117 : vector<16x64xf32>
    %c0_68 = arith.constant 0 : index
    %c0_69 = arith.constant 0 : index
    %119 = vector.load %arg8[%c0_68, %c0_69] : memref<1x64xf32, #tpu.memory_space<vmem>>, vector<1x64xf32>
    %120 = vector.shape_cast %119 : vector<1x64xf32> to vector<64xf32>
    %121 = vector.shape_cast %120 : vector<64xf32> to vector<1x64xf32>
    %122 = vector.broadcast %121 : vector<1x64xf32> to vector<16x64xf32>
    %123 = arith.mulf %118, %122 : vector<16x64xf32>
    %124 = arith.addf %1, %123 : vector<16x64xf32>
    %c0_70 = arith.constant 0 : index
    %c0_71 = arith.constant 0 : index
    %c0_72 = arith.constant 0 : index
    %125 = vector.load %arg9[%c0_70, %c0_71, %c0_72] : memref<1x16x64xf32, #tpu.memory_space<vmem>>, vector<1x16x64xf32>
    %126 = vector.shape_cast %125 : vector<1x16x64xf32> to vector<16x64xf32>
    %127 = vector.shape_cast %124 : vector<16x64xf32> to vector<1x16x64xf32>
    tpu.vector_store %arg9[%c0_70, %c0_71, %c0_72], %127 {strides = array<i32>} : memref<1x16x64xf32, #tpu.memory_space<vmem>>, vector<1x16x64xf32>,
    return
  }
  func.func @transform_0(%arg0: i32) -> (i32, i32, i32) {
    %c0_i32 = arith.constant 0 : i32
    %c0_i32_0 = arith.constant 0 : i32
    %c0_i32_1 = arith.constant 0 : i32
    return %arg0, %c0_i32, %c0_i32_0 : i32, i32, i32
  }
  func.func @transform_1(%arg0: i32) -> (i32, i32) {
    %c0_i32 = arith.constant 0 : i32
    %c0_i32_0 = arith.constant 0 : i32
    %c0_i32_1 = arith.constant 0 : i32
    return %c0_i32, %c0_i32_0 : i32, i32
  }
  func.func @transform_2(%arg0: i32) -> (i32, i32) {
    %c0_i32 = arith.constant 0 : i32
    %c0_i32_0 = arith.constant 0 : i32
    %c0_i32_1 = arith.constant 0 : i32
    return %c0_i32, %c0_i32_0 : i32, i32
  }
  func.func @transform_3(%arg0: i32) -> (i32, i32) {
    %c0_i32 = arith.constant 0 : i32
    %c0_i32_0 = arith.constant 0 : i32
    %c0_i32_1 = arith.constant 0 : i32
    return %c0_i32, %c0_i32_0 : i32, i32
  }
  func.func @transform_4(%arg0: i32) -> (i32, i32) {
    %c0_i32 = arith.constant 0 : i32
    %c0_i32_0 = arith.constant 0 : i32
    %c0_i32_1 = arith.constant 0 : i32
    return %c0_i32, %c0_i32_0 : i32, i32
  }
  func.func @transform_5(%arg0: i32) -> (i32, i32) {
    %c0_i32 = arith.constant 0 : i32
    %c0_i32_0 = arith.constant 0 : i32
    %c0_i32_1 = arith.constant 0 : i32
    return %c0_i32, %c0_i32_0 : i32, i32
  }
  func.func @transform_6(%arg0: i32) -> (i32, i32) {
    %c0_i32 = arith.constant 0 : i32
    %c0_i32_0 = arith.constant 0 : i32
    %c0_i32_1 = arith.constant 0 : i32
    return %c0_i32, %c0_i32_0 : i32, i32
  }
  func.func @transform_7(%arg0: i32) -> (i32, i32) {
    %c0_i32 = arith.constant 0 : i32
    %c0_i32_0 = arith.constant 0 : i32
    %c0_i32_1 = arith.constant 0 : i32
    return %c0_i32, %c0_i32_0 : i32, i32
  }
  func.func @transform_8(%arg0: i32) -> (i32, i32, i32) {
    %c0_i32 = arith.constant 0 : i32
    %c0_i32_0 = arith.constant 0 : i32
    %c0_i32_1 = arith.constant 0 : i32
    return %arg0, %c0_i32, %c0_i32_0 : i32, i32, i32
  }
}

</mosaic_0001>

<llo_original>
// kernel: tpu_custom_call.1
$region0: #{tpu_custom_call.1}
  #allocation0 [shape = 'u32[]', space=smem, size = 0x4, offset = 0x4, fixed_abs, tag = 'smem constant byte address 0x4 - core index']
  #allocation1 [shape = 'u32[72,128]{1,0:T(1,128)}', space=vmem, size = 0x9000, scoped, tag = 'internal scratch']
  #allocation2 [shape = 'bf16[16,64]{1,0:T(8,128)(2,1)}', space=vmem, size = 0x1000, scoped, tag = 'scratch operand']
  #allocation3 [shape = 'bf16[16,128]{1,0:T(8,128)(2,1)}', space=vmem, size = 0x1000, scoped, tag = 'scratch operand']
  #allocation4 [shape = 'bf16[16,64]{1,0:T(8,128)(2,1)}', space=vmem, size = 0x1000, scoped, tag = 'scratch operand']
  %s0 = inlined_call_operand.hbm [shape: f32[2,16,64], index: 0, kind: input, shape index: {}]
  %s1 = inlined_call_operand.hbm [shape: f32[1,64], index: 1, kind: input, shape index: {}]
  %s2 = inlined_call_operand.vmem [shape: f32[1,64], index: 2, kind: input, shape index: {}]
  %s3 = inlined_call_operand.hbm [shape: bf16[64,64], index: 3, kind: input, shape index: {}]
  %s4 = inlined_call_operand.hbm [shape: bf16[64,128], index: 4, kind: input, shape index: {}]
  %s5 = inlined_call_operand.hbm [shape: bf16[64,64], index: 5, kind: input, shape index: {}]
  %s6 = inlined_call_operand.vmem [shape: f32[1,64], index: 6, kind: input, shape index: {}]
  %s7 = inlined_call_operand.vmem [shape: f32[1,64], index: 7, kind: input, shape index: {}]
  %s8 = inlined_call_operand.hbm [shape: f32[2,16,64], index: 8, kind: output, shape index: {}]
  %s9 = sld [smem:[#allocation0]]
  $region85: #{tpu_custom_call.1} parent=0
    _
  %s11 = ssub.s32 1, %s9
  %s12 = scalar_select 0, %s11, %s9
  $region1: #{tpu_custom_call.1} parent=0
    #allocation5 [shape = 'u8[16384]{0}', space=vmem, size = 0x4000, scoped, tag = 'input window, operand 0']
    #allocation6 [shape = 's32[2]{0}', space=sflag, size = 0x8, scoped, tag = 'scoped memory for tpu_custom_call.1']
    #allocation7 [shape = 's32[2]{0}', space=sflag, size = 0x8, scoped, tag = 'scoped memory for tpu_custom_call.1']
    #allocation8 [shape = 'u8[512]{0}', space=vmem, size = 0x400, scoped, tag = 'input window, operand 1, single buffered']
    #allocation9 [shape = 's32[1]{0}', space=sflag, size = 0x4, scoped, tag = 'scoped memory for tpu_custom_call.1']
    #allocation10 [shape = 'u8[16384]{0}', space=vmem, size = 0x4000, scoped, tag = 'input window, operand 3, single buffered']
    #allocation11 [shape = 'u8[16384]{0}', space=vmem, size = 0x4000, scoped, tag = 'input window, operand 4, single buffered']
    #allocation12 [shape = 's32[1]{0}', space=sflag, size = 0x4, scoped, tag = 'scoped memory for tpu_custom_call.1']
    #allocation13 [shape = 'u8[16384]{0}', space=vmem, size = 0x4000, scoped, tag = 'input window, operand 5, single buffered']
    #allocation14 [shape = 'u8[16384]{0}', space=vmem, size = 0x4000, scoped, tag = 'output window, operand 0']
    %13 = vsyncpa [#allocation6], 0
    %s14 = scalar_lea.sflag [#allocation6], 1
    %15 = vsyncpa %s14, 0
    %16 = vsyncpa [#allocation9], 0
    %17 = vsyncpa [#allocation12], 0
    %18 = vsyncpa [#allocation7], 0
    %s19 = scalar_lea.sflag [#allocation7], 1
    %20 = vsyncpa %s19, 0
    loop: start=0, step=1, limit=4
    $region2: #{tpu_custom_call.1} parent=1 // loop_pre_header
      _
    $region3: #{tpu_custom_call.1} parent=1 // loop_header
      %s22 = sphi 0, %s26
      %p23 = scmp.ge.s32.totalorder %s22, 4
      %s32 = sphi 0, %s34
      %s35 = sphi 0, %s32
      %s36 = sphi 0, %s35
      %s52 = sphi 0, %s36
      %s56 = sphi 0, %s56
      %s58 = sphi 0, %s56
      %s59 = sphi 0, %s58
      %s73 = sphi 0, %s59
      %s77 = sphi 0, %s77
      %s79 = sphi 0, %s77
      %s80 = sphi 0, %s79
      %s94 = sphi 0, %s80
      %s98 = sphi 0, %s98
      %s100 = sphi 0, %s98
      %s101 = sphi 0, %s100
      %s115 = sphi 0, %s101
      %s119 = sphi 0, %s119
      %s121 = sphi 0, %s119
      %s122 = sphi 0, %s121
      %s136 = sphi 0, %s122
      %s140 = sphi 0, %s140
      %s142 = sphi 0, %s140
      %s143 = sphi 0, %s142
      %s157 = sphi 0, %s143
      %s161 = sphi 0, %s161
      %s163 = sphi 0, %s161
      %s164 = sphi 0, %s163
      %s178 = sphi 0, %s164
      %s182 = sphi 0, %s182
      %s184 = sphi 0, %s182
      %s185 = sphi 0, %s184
      %s199 = sphi 0, %s185
      %s205 = sphi 0, %s207
      %s208 = sphi 0, %s205
      %s209 = sphi 0, %s208
      %s225 = sphi 0, %s209
    $region4: #{tpu_custom_call.1} parent=1 // loop_header_branch
      %25 = sbr.rel (%p23) target = $region8
    $region5: #{tpu_custom_call.1} parent=1 // loop_body
      %s27 = ssub.s32 %s22, 1
      %s28 = ssub.s32 %s22, 2
      %s29 = sadd.s32 %s22, 1
      %s30 = ssub.s32 %s22, %s29
      %p31 = scmp.eq.s32.totalorder %s30, 0
      %s33 = sadd.s32 %s32, 1
      %s34 = scalar_select %p31, %s32, %s33
      %p37 = pneg %p31
      %p38 = scmp.eq.s32.totalorder %s22, 1
      %p39 = por %p37, %p38
      %p40 = scmp.ne.s32.totalorder %s32, %s35
      %p41 = scmp.eq.s32.totalorder %s22, 0
      %p42 = por %p40, %p41
      %p43 = scmp.ne.s32.totalorder %s32, %s35
      %p44 = scmp.eq.s32.totalorder %s27, 1
      %p45 = por %p43, %p44
      %p46 = scmp.ne.s32.totalorder %s35, %s36
      %p47 = scmp.eq.s32.totalorder %s27, 0
      %p48 = por %p46, %p47
      %p49 = scmp.ne.s32.totalorder %s35, %s36
      %p50 = scmp.eq.s32.totalorder %s28, 1
      %p51 = por %p49, %p50
      %p53 = scmp.ne.s32.totalorder %s36, %s52
      %p54 = scmp.eq.s32.totalorder %s28, 0
      %p55 = por %p53, %p54
      %s57 = sadd.s32 %s56, 1
      %p60 = scmp.eq.s32.totalorder %s22, 1
      %p61 = scmp.ne.s32.totalorder %s56, %s58
      %p62 = scmp.eq.s32.totalorder %s22, 0
      %p63 = por %p61, %p62
      %p64 = scmp.ne.s32.totalorder %s56, %s58
      %p65 = scmp.eq.s32.totalorder %s27, 1
      %p66 = por %p64, %p65
      %p67 = scmp.ne.s32.totalorder %s58, %s59
      %p68 = scmp.eq.s32.totalorder %s27, 0
      %p69 = por %p67, %p68
      %p70 = scmp.ne.s32.totalorder %s58, %s59
      %p71 = scmp.eq.s32.totalorder %s28, 1
      %p72 = por %p70, %p71
      %p74 = scmp.ne.s32.totalorder %s59, %s73
      %p75 = scmp.eq.s32.totalorder %s28, 0
      %p76 = por %p74, %p75
      %s78 = sadd.s32 %s77, 1
      %p81 = scmp.eq.s32.totalorder %s22, 1
      %p82 = scmp.ne.s32.totalorder %s77, %s79
      %p83 = scmp.eq.s32.totalorder %s22, 0
      %p84 = por %p82, %p83
      %p85 = scmp.ne.s32.totalorder %s77, %s79
      %p86 = scmp.eq.s32.totalorder %s27, 1
      %p87 = por %p85, %p86
      %p88 = scmp.ne.s32.totalorder %s79, %s80
      %p89 = scmp.eq.s32.totalorder %s27, 0
      %p90 = por %p88, %p89
      %p91 = scmp.ne.s32.totalorder %s79, %s80
      %p92 = scmp.eq.s32.totalorder %s28, 1
      %p93 = por %p91, %p92
      %p95 = scmp.ne.s32.totalorder %s80, %s94
      %p96 = scmp.eq.s32.totalorder %s28, 0
      %p97 = por %p95, %p96
      %s99 = sadd.s32 %s98, 1
      %p102 = scmp.eq.s32.totalorder %s22, 1
      %p103 = scmp.ne.s32.totalorder %s98, %s100
      %p104 = scmp.eq.s32.totalorder %s22, 0
      %p105 = por %p103, %p104
      %p106 = scmp.ne.s32.totalorder %s98, %s100
      %p107 = scmp.eq.s32.totalorder %s27, 1
      %p108 = por %p106, %p107
      %p109 = scmp.ne.s32.totalorder %s100, %s101
      %p110 = scmp.eq.s32.totalorder %s27, 0
      %p111 = por %p109, %p110
      %p112 = scmp.ne.s32.totalorder %s100, %s101
      %p113 = scmp.eq.s32.totalorder %s28, 1
      %p114 = por %p112, %p113
      %p116 = scmp.ne.s32.totalorder %s101, %s115
      %p117 = scmp.eq.s32.totalorder %s28, 0
      %p118 = por %p116, %p117
      %s120 = sadd.s32 %s119, 1
      %p123 = scmp.eq.s32.totalorder %s22, 1
      %p124 = scmp.ne.s32.totalorder %s119, %s121
      %p125 = scmp.eq.s32.totalorder %s22, 0
      %p126 = por %p124, %p125
      %p127 = scmp.ne.s32.totalorder %s119, %s121
      %p128 = scmp.eq.s32.totalorder %s27, 1
      %p129 = por %p127, %p128
      %p130 = scmp.ne.s32.totalorder %s121, %s122
      %p131 = scmp.eq.s32.totalorder %s27, 0
      %p132 = por %p130, %p131
      %p133 = scmp.ne.s32.totalorder %s121, %s122
      %p134 = scmp.eq.s32.totalorder %s28, 1
      %p135 = por %p133, %p134
      %p137 = scmp.ne.s32.totalorder %s122, %s136
      %p138 = scmp.eq.s32.totalorder %s28, 0
      %p139 = por %p137, %p138
      %s141 = sadd.s32 %s140, 1
      %p144 = scmp.eq.s32.totalorder %s22, 1
      %p145 = scmp.ne.s32.totalorder %s140, %s142
      %p146 = scmp.eq.s32.totalorder %s22, 0
      %p147 = por %p145, %p146
      %p148 = scmp.ne.s32.totalorder %s140, %s142
      %p149 = scmp.eq.s32.totalorder %s27, 1
      %p150 = por %p148, %p149
      %p151 = scmp.ne.s32.totalorder %s142, %s143
      %p152 = scmp.eq.s32.totalorder %s27, 0
      %p153 = por %p151, %p152
      %p154 = scmp.ne.s32.totalorder %s142, %s143
      %p155 = scmp.eq.s32.totalorder %s28, 1
      %p156 = por %p154, %p155
      %p158 = scmp.ne.s32.totalorder %s143, %s157
      %p159 = scmp.eq.s32.totalorder %s28, 0
      %p160 = por %p158, %p159
      %s162 = sadd.s32 %s161, 1
      %p165 = scmp.eq.s32.totalorder %s22, 1
      %p166 = scmp.ne.s32.totalorder %s161, %s163
      %p167 = scmp.eq.s32.totalorder %s22, 0
      %p168 = por %p166, %p167
      %p169 = scmp.ne.s32.totalorder %s161, %s163
      %p170 = scmp.eq.s32.totalorder %s27, 1
      %p171 = por %p169, %p170
      %p172 = scmp.ne.s32.totalorder %s163, %s164
      %p173 = scmp.eq.s32.totalorder %s27, 0
      %p174 = por %p172, %p173
      %p175 = scmp.ne.s32.totalorder %s163, %s164
      %p176 = scmp.eq.s32.totalorder %s28, 1
      %p177 = por %p175, %p176
      %p179 = scmp.ne.s32.totalorder %s164, %s178
      %p180 = scmp.eq.s32.totalorder %s28, 0
      %p181 = por %p179, %p180
      %s183 = sadd.s32 %s182, 1
      %p186 = scmp.eq.s32.totalorder %s22, 1
      %p187 = scmp.ne.s32.totalorder %s182, %s184
      %p188 = scmp.eq.s32.totalorder %s22, 0
      %p189 = por %p187, %p188
      %p190 = scmp.ne.s32.totalorder %s182, %s184
      %p191 = scmp.eq.s32.totalorder %s27, 1
      %p192 = por %p190, %p191
      %p193 = scmp.ne.s32.totalorder %s184, %s185
      %p194 = scmp.eq.s32.totalorder %s27, 0
      %p195 = por %p193, %p194
      %p196 = scmp.ne.s32.totalorder %s184, %s185
      %p197 = scmp.eq.s32.totalorder %s28, 1
      %p198 = por %p196, %p197
      %p200 = scmp.ne.s32.totalorder %s185, %s199
      %p201 = scmp.eq.s32.totalorder %s28, 0
      %p202 = por %p200, %p201
      %s203 = ssub.s32 %s22, %s29
      %p204 = scmp.eq.s32.totalorder %s203, 0
      %s206 = sadd.s32 %s205, 1
      %s207 = scalar_select %p204, %s205, %s206
      %p210 = pneg %p204
      %p211 = scmp.eq.s32.totalorder %s22, 1
      %p212 = por %p210, %p211
      %p213 = scmp.ne.s32.totalorder %s205, %s208
      %p214 = scmp.eq.s32.totalorder %s22, 0
      %p215 = por %p213, %p214
      %p216 = scmp.ne.s32.totalorder %s205, %s208
      %p217 = scmp.eq.s32.totalorder %s27, 1
      %p218 = por %p216, %p217
      %p219 = scmp.ne.s32.totalorder %s208, %s209
      %p220 = scmp.eq.s32.totalorder %s27, 0
      %p221 = por %p219, %p220
      %p222 = scmp.ne.s32.totalorder %s208, %s209
      %p223 = scmp.eq.s32.totalorder %s28, 1
      %p224 = por %p222, %p223
      %p226 = scmp.ne.s32.totalorder %s209, %s225
      %p227 = scmp.eq.s32.totalorder %s28, 0
      %p228 = por %p226, %p227
      %p229 = scmp.le.s32.totalorder 1, %s22
      %p230 = scmp.lt.s32.totalorder %s22, 3
      %p231 = pnand %p229, %p230
      %p232 = pneg %p231
      // Predicated region
      $region9: #{tpu_custom_call.1} parent=5 // pred_check
        _
      $region10: #{tpu_custom_call.1} parent=5 // pred_check_branch
        %234 = sbr.rel (%p231) target = $region12
      $region11: #{tpu_custom_call.1} parent=5 // pred_region
        %s235 = ssub.s32 %s22, 1
        // Predicated region
        $region13: #{tpu_custom_call.1} parent=11 // pred_check
          %p236 = pneg %p69
        $region14: #{tpu_custom_call.1} parent=11 // pred_check_branch
          %238 = sbr.rel (%p236) target = $region16
        $region15: #{tpu_custom_call.1} parent=11 // pred_region
          %240 = vsyncadd [#allocation9], 0
          %s242 = sshll.u32 %s1, 4
          %s243 = int_to_ptr.hbm [resolvable:$true] %s242
          %s244 = sshll.u32 [#allocation8], 4
          %s245 = int_to_ptr.vmem [resolvable:$true] %s244
          %247 = dma.hbm_to_vmem [thread:$0]  %s243, 16, %s245, [#allocation9]
        $region16: #{tpu_custom_call.1} parent=11 // pred_fallthru
          _
        // Predicated region
        $region17: #{tpu_custom_call.1} parent=11 // pred_check
          %p248 = pneg %p90
        $region18: #{tpu_custom_call.1} parent=11 // pred_check_branch
          %250 = sbr.rel (%p248) target = $region20
        $region19: #{tpu_custom_call.1} parent=11 // pred_region
          _
        $region20: #{tpu_custom_call.1} parent=11 // pred_fallthru
          _
        // Predicated region
        $region21: #{tpu_custom_call.1} parent=11 // pred_check
          %p251 = pneg %p111
        $region22: #{tpu_custom_call.1} parent=11 // pred_check_branch
          %253 = sbr.rel (%p251) target = $region24
        $region23: #{tpu_custom_call.1} parent=11 // pred_region
          %255 = vsyncadd [#allocation9], 0
          %s256 = sshll.u32 %s3, 4
          %s257 = int_to_ptr.hbm [resolvable:$true] %s256
          %s258 = sshll.u32 [#allocation10], 4
          %s259 = int_to_ptr.vmem [resolvable:$true] %s258
          %264 = dma.hbm_to_vmem [thread:$0]  %s257, 512, %s259, [#allocation9], 64, 64, 4
        $region24: #{tpu_custom_call.1} parent=11 // pred_fallthru
          _
        // Predicated region
        $region25: #{tpu_custom_call.1} parent=11 // pred_check
          %p265 = pneg %p132
        $region26: #{tpu_custom_call.1} parent=11 // pred_check_branch
          %267 = sbr.rel (%p265) target = $region28
        $region27: #{tpu_custom_call.1} parent=11 // pred_region
          %269 = vsyncadd [#allocation12], 0
          %s270 = sshll.u32 %s4, 4
          %s271 = int_to_ptr.hbm [resolvable:$true] %s270
          %s272 = sshll.u32 [#allocation11], 4
          %s273 = int_to_ptr.vmem [resolvable:$true] %s272
          %278 = dma.hbm_to_vmem [thread:$0]  %s271, 512, %s273, [#allocation12], 64, 64, 4
        $region28: #{tpu_custom_call.1} parent=11 // pred_fallthru
          _
        // Predicated region
        $region29: #{tpu_custom_call.1} parent=11 // pred_check
          %p279 = pneg %p153
        $region30: #{tpu_custom_call.1} parent=11 // pred_check_branch
          %281 = sbr.rel (%p279) target = $region32
        $region31: #{tpu_custom_call.1} parent=11 // pred_region
          %283 = vsyncadd [#allocation12], 0
          %s284 = sshll.u32 %s5, 4
          %s285 = int_to_ptr.hbm [resolvable:$true] %s284
          %s286 = sshll.u32 [#allocation13], 4
          %s287 = int_to_ptr.vmem [resolvable:$true] %s286
          %292 = dma.hbm_to_vmem [thread:$0]  %s285, 512, %s287, [#allocation12], 64, 64, 4
        $region32: #{tpu_custom_call.1} parent=11 // pred_fallthru
          _
        // Predicated region
        $region33: #{tpu_custom_call.1} parent=11 // pred_check
          %p293 = pneg %p174
        $region34: #{tpu_custom_call.1} parent=11 // pred_check_branch
          %295 = sbr.rel (%p293) target = $region36
        $region35: #{tpu_custom_call.1} parent=11 // pred_region
          _
        $region36: #{tpu_custom_call.1} parent=11 // pred_fallthru
          _
        // Predicated region
        $region37: #{tpu_custom_call.1} parent=11 // pred_check
          %p296 = pneg %p195
        $region38: #{tpu_custom_call.1} parent=11 // pred_check_branch
          %298 = sbr.rel (%p296) target = $region40
        $region39: #{tpu_custom_call.1} parent=11 // pred_region
          _
        $region40: #{tpu_custom_call.1} parent=11 // pred_fallthru
          _
      $region12: #{tpu_custom_call.1} parent=5 // pred_fallthru
        _
      %p299 = scmp.lt.s32.totalorder %s22, 2
      // Predicated region
      $region41: #{tpu_custom_call.1} parent=5 // pred_check
        %p300 = pneg %p299
      $region42: #{tpu_custom_call.1} parent=5 // pred_check_branch
        %302 = sbr.rel (%p300) target = $region44
      $region43: #{tpu_custom_call.1} parent=5 // pred_region
        // Predicated region
        $region45: #{tpu_custom_call.1} parent=43 // pred_check
          %p303 = pneg %p42
        $region46: #{tpu_custom_call.1} parent=43 // pred_check_branch
          %305 = sbr.rel (%p303) target = $region48
        $region47: #{tpu_custom_call.1} parent=43 // pred_region
          %s306 = sand.u32 %s32, 1
          %s307 = scalar_lea.sflag [#allocation6], %s306
          %s308 = sand.u32 %s32, 1
          %s309 = smul.addr %s308, 16
          %s310 = scalar_lea.vmem [#allocation5], %s309
          %312 = vsyncadd %s307, 0
          %s313 = smul.addr %s22, 2
          %s314 = smul.addr %s313, 8
          %s315 = scalar_lea.hbm %s0, %s314
          %s316 = sshll.u32 %s315, 4
          %s317 = int_to_ptr.hbm [resolvable:$true] %s316
          %s318 = sshll.u32 %s310, 4
          %s319 = int_to_ptr.vmem [resolvable:$true] %s318
          %324 = dma.hbm_to_vmem [thread:$0]  %s317, 256, %s319, %s307, 128, 128, 8
        $region48: #{tpu_custom_call.1} parent=43 // pred_fallthru
          _
      $region44: #{tpu_custom_call.1} parent=5 // pred_fallthru
        _
      %p325 = scmp.le.s32.totalorder 1, %s22
      %p326 = scmp.lt.s32.totalorder %s22, 3
      %p327 = pnand %p325, %p326
      %p328 = pneg %p327
      // Predicated region
      $region49: #{tpu_custom_call.1} parent=5 // pred_check
        _
      $region50: #{tpu_custom_call.1} parent=5 // pred_check_branch
        %330 = sbr.rel (%p327) target = $region52
      $region51: #{tpu_custom_call.1} parent=5 // pred_region
        %s331 = ssub.s32 %s22, 1
        %s332 = sand.u32 %s35, 1
        %s333 = scalar_lea.sflag [#allocation6], %s332
        %s334 = sand.u32 %s35, 1
        %s335 = smul.addr %s334, 16
        %s336 = scalar_lea.vmem [#allocation5], %s335
        // Predicated region
        $region53: #{tpu_custom_call.1} parent=51 // pred_check
          %p337 = pneg %p48
        $region54: #{tpu_custom_call.1} parent=51 // pred_check_branch
          %339 = sbr.rel (%p337) target = $region56
        $region55: #{tpu_custom_call.1} parent=51 // pred_region
          %341 = dma.done %s333, 256
        $region56: #{tpu_custom_call.1} parent=51 // pred_fallthru
          _
        // Predicated region
        $region57: #{tpu_custom_call.1} parent=51 // pred_check
          %p342 = pneg %p69
        $region58: #{tpu_custom_call.1} parent=51 // pred_check_branch
          %344 = sbr.rel (%p342) target = $region60
        $region59: #{tpu_custom_call.1} parent=51 // pred_region
          %346 = dma.done [#allocation9], 16
        $region60: #{tpu_custom_call.1} parent=51 // pred_fallthru
          _
        // Predicated region
        $region61: #{tpu_custom_call.1} parent=51 // pred_check
          %p347 = pneg %p111
        $region62: #{tpu_custom_call.1} parent=51 // pred_check_branch
          %349 = sbr.rel (%p347) target = $region64
        $region63: #{tpu_custom_call.1} parent=51 // pred_region
          %351 = dma.done [#allocation9], 512
        $region64: #{tpu_custom_call.1} parent=51 // pred_fallthru
          _
        // Predicated region
        $region65: #{tpu_custom_call.1} parent=51 // pred_check
          %p352 = pneg %p132
        $region66: #{tpu_custom_call.1} parent=51 // pred_check_branch
          %354 = sbr.rel (%p352) target = $region68
        $region67: #{tpu_custom_call.1} parent=51 // pred_region
          %356 = dma.done [#allocation12], 512
        $region68: #{tpu_custom_call.1} parent=51 // pred_fallthru
          _
        // Predicated region
        $region69: #{tpu_custom_call.1} parent=51 // pred_check
          %p357 = pneg %p153
        $region70: #{tpu_custom_call.1} parent=51 // pred_check_branch
          %359 = sbr.rel (%p357) target = $region72
        $region71: #{tpu_custom_call.1} parent=51 // pred_region
          %361 = dma.done [#allocation12], 512
        $region72: #{tpu_custom_call.1} parent=51 // pred_fallthru
          _
        %s362 = sand.u32 %s35, 1
        %s363 = scalar_lea.sflag [#allocation6], %s362
        %s364 = sand.u32 %s35, 1
        %s365 = smul.addr %s364, 16
        %s366 = scalar_lea.vmem [#allocation5], %s365
        %p367 = pneg %p48
        %p368 = pneg %p45
        %p369 = pneg %p69
        %p370 = pneg %p66
        %p371 = pneg %p90
        %p372 = pneg %p87
        %p373 = pneg %p111
        %p374 = pneg %p108
        %p375 = pneg %p132
        %p376 = pneg %p129
        %p377 = pneg %p153
        %p378 = pneg %p150
        %p379 = pneg %p174
        %p380 = pneg %p171
        %p381 = pneg %p195
        %p382 = pneg %p192
        %p383 = pneg %p221
        %p384 = pneg %p218
        %s385 = sand.u32 %s208, 1
        %s386 = scalar_lea.sflag [#allocation7], %s385
        %s387 = sand.u32 %s208, 1
        %s388 = smul.addr %s387, 16
        %s389 = scalar_lea.vmem [#allocation14], %s388
        %v391 = vld [vmem:[%s336] sm:$0xff]
        %v392 = vld [vmem:[%s336 + $0x8] sm:$0xff]
        %v393 = vld [vmem:[#allocation8] sm:$0x1]
        %v394 = vld [vmem:[%s2] sm:$0x1]
        %vm395 = vcmask 523264
        %v396 = vsel %vm395, %v391, 0.0
        %397 = vadd.xlane.f32.xlu0 %v396
        %v398 = vpop.xlane.xlu0 %397
        %v399 = vsel %vm395, %v392, 0.0
        %400 = vadd.xlane.f32.xlu0 %v399
        %v401 = vpop.xlane.xlu0 %400
        %v402 = vrcp.pop 64.0
        %v403 = vmul.f32 64.0, %v402
        %v404 = vsub.f32 1.0, %v403
        %v405 = vmul.f32 %v402, %v404
        %v406 = vadd.f32 %v402, %v405
        %vm407 = vweird.f32 %v402
        %v408 = vsel %vm407, %v402, %v406
        %v409 = vmul.f32 %v398, %v408
        %v410 = vmul.f32 %v401, %v408
        %v411 = vsub.f32 %v391, %v409
        %v412 = vsub.f32 %v392, %v410
        %v413 = vmul.f32 %v411, %v411
        %v414 = vmul.f32 %v412, %v412
        %v415 = vsel %vm395, %v413, 0.0
        %416 = vadd.xlane.f32.xlu0 %v415
        %v417 = vpop.xlane.xlu0 %416
        %v418 = vsel %vm395, %v414, 0.0
        %419 = vadd.xlane.f32.xlu0 %v418
        %v420 = vpop.xlane.xlu0 %419
        %v421 = vmul.f32 %v417, %v408
        %v422 = vmul.f32 %v420, %v408
        %v423 = vadd.f32 %v421, 1e-06
        %v424 = vadd.f32 %v422, 1e-06
        %v425 = vrsqrt.pop %v423
        %v426 = vmul.f32 %v425, %v423
        %v427 = vmul.f32 %v426, %v425
        %v428 = vmul.f32 0.5, %v427
        %v429 = vsub.f32 1.5, %v428
        %v430 = vmul.f32 %v425, %v429
        %vm431 = vweird.f32 %v423
        %vm432 = vweird.f32 %v425
        %vm433 = vmor %vm431, %vm432
        %v434 = vsel %vm433, %v425, %v430
        %v435 = vrsqrt.pop %v424
        %v436 = vmul.f32 %v435, %v424
        %v437 = vmul.f32 %v436, %v435
        %v438 = vmul.f32 0.5, %v437
        %v439 = vsub.f32 1.5, %v438
        %v440 = vmul.f32 %v435, %v439
        %vm441 = vweird.f32 %v424
        %vm442 = vweird.f32 %v435
        %vm443 = vmor %vm441, %vm442
        %v444 = vsel %vm443, %v435, %v440
        %v445 = vmul.f32 %v411, %v434
        %v446 = vmul.f32 %v412, %v444
        %v448 = vperm.slane %v393, 0
        %v450 = vmul.f32 %v445, %v448
        %v451 = vmul.f32 %v446, %v448
        %v453 = vperm.slane %v394, 0
        %v455 = vadd.f32 %v450, %v453
        %v456 = vadd.f32 %v451, %v453
        %v457 = vpack.c.bf16 %v456, %v455
        %v458 = vld [vmem:[#allocation10] sm:$0xf]
        %v459 = vld [vmem:[#allocation10 + $0x4] sm:$0xf]
        %v460 = vld [vmem:[#allocation10 + $0x8] sm:$0xf]
        %v461 = vld [vmem:[#allocation10 + $0xc] sm:$0xf]
        %v462 = vld [vmem:[#allocation10 + $0x10] sm:$0xf]
        %v463 = vld [vmem:[#allocation10 + $0x14] sm:$0xf]
        %v464 = vld [vmem:[#allocation10 + $0x18] sm:$0xf]
        %v465 = vld [vmem:[#allocation10 + $0x1c] sm:$0xf]
        %v474 = vunpack.c.l.b16 %v458
        %v475 = vunpack.c.l.b16 %v459
        %v476 = vunpack.c.l.b16 %v460
        %v477 = vunpack.c.l.b16 %v461
        %v478 = vunpack.c.l.b16 %v462
        %v479 = vunpack.c.l.b16 %v463
        %v480 = vunpack.c.l.b16 %v464
        %v481 = vunpack.c.l.b16 %v465
        %v482 = vpack.c.b16 %v475, %v474
        %v483 = vpack.c.b16 %v477, %v476
        %v484 = vpack.c.b16 %v479, %v478
        %v485 = vpack.c.b16 %v481, %v480
        %v491 = vsel %vm395, %v457, 0
        %493 = vmatpush.bf16.msra.mxu0 0
        %494 = vmatpush.bf16.msra.mxu0 0
        %495 = vmatpush.bf16.msra.mxu0 0
        %496 = vmatpush.bf16.msra.mxu0 0
        %497 = vmatpush.bf16.msra.mxu0 %v485
        %498 = vmatpush.bf16.msra.mxu0 %v484
        %499 = vmatpush.bf16.msra.mxu0 %v483
        %500 = vmatpush.bf16.msra.mxu0 %v482
        %501 = vmatmul.bf16.gmra.mxu0 %v491
        %v502 = vpop.f32.mrf.mxu0
        %v503 = vadd.f32 0.0, %v502
        %v504 = vpop.f32.mrf.mxu0
        %v505 = vadd.f32 0.0, %v504
        %506 = vdwg.mxu0
        %v507 = vpack.c.bf16 %v503, %v503
        %v508 = vpack.c.bf16 %v505, %v505
        %vm509 = vcmask 519168
        %510 = vst.msk [vmem:[#allocation2] sm:$0xf] %vm509, %v507
        %511 = vst.msk [vmem:[#allocation2 + $0x4] sm:$0xf] %vm509, %v508
        %v512 = vld [vmem:[#allocation11] sm:$0xf]
        %v513 = vld [vmem:[#allocation11 + $0x4] sm:$0xf]
        %v514 = vld [vmem:[#allocation11 + $0x8] sm:$0xf]
        %v515 = vld [vmem:[#allocation11 + $0xc] sm:$0xf]
        %v516 = vld [vmem:[#allocation11 + $0x10] sm:$0xf]
        %v517 = vld [vmem:[#allocation11 + $0x14] sm:$0xf]
        %v518 = vld [vmem:[#allocation11 + $0x18] sm:$0xf]
        %v519 = vld [vmem:[#allocation11 + $0x1c] sm:$0xf]
        %v528 = vunpack.c.l.b16 %v512
        %v529 = vunpack.c.l.b16 %v513
        %v530 = vunpack.c.l.b16 %v514
        %v531 = vunpack.c.l.b16 %v515
        %v532 = vunpack.c.l.b16 %v516
        %v533 = vunpack.c.l.b16 %v517
        %v534 = vunpack.c.l.b16 %v518
        %v535 = vunpack.c.l.b16 %v519
        %v536 = vpack.c.b16 %v529, %v528
        %v537 = vpack.c.b16 %v531, %v530
        %v538 = vpack.c.b16 %v533, %v532
        %v539 = vpack.c.b16 %v535, %v534
        %544 = vmatpush.bf16.msra.mxu0 0
        %545 = vmatpush.bf16.msra.mxu0 0
        %546 = vmatpush.bf16.msra.mxu0 0
        %547 = vmatpush.bf16.msra.mxu0 0
        %548 = vmatpush.bf16.msra.mxu0 %v539
        %549 = vmatpush.bf16.msra.mxu0 %v538
        %550 = vmatpush.bf16.msra.mxu0 %v537
        %551 = vmatpush.bf16.msra.mxu0 %v536
        %552 = vmatmul.bf16.gmra.mxu0 %v491
        %v553 = vpop.f32.mrf.mxu0
        %v554 = vadd.f32 0.0, %v553
        %v555 = vpop.f32.mrf.mxu0
        %v556 = vadd.f32 0.0, %v555
        %557 = vdwg.mxu0
        %v558 = vpack.c.bf16 %v554, %v554
        %v559 = vpack.c.bf16 %v556, %v556
        %560 = vst [vmem:[#allocation3] sm:$0xf] %v558
        %561 = vst [vmem:[#allocation3 + $0x4] sm:$0xf] %v559
        %v562 = vld [vmem:[#allocation2] sm:$0xf]
        %v563 = vld [vmem:[#allocation2 + $0x4] sm:$0xf]
        %v564 = vld [vmem:[#allocation3] sm:$0xf]
        %v565 = vld [vmem:[#allocation3 + $0x4] sm:$0xf]
        %v568 = vunpack.c.l.b16 %v562
        %v569 = vunpack.c.l.b16 %v563
        %v570 = vpack.c.b16 %v569, %v568
        %v573 = vunpack.c.l.b16 %v564
        %v574 = vunpack.c.l.b16 %v565
        %v575 = vpack.c.b16 %v574, %v573
        %vm576 = vcmask 130048
        %v578 = vsel %vm576, %v570, 0
        %v581 = vsel %vm576, %v575, 0
        %583 = vmatpush.bf16.xpose.msra.mxu0 0
        %584 = vmatpush.bf16.xpose.msra.mxu0 0
        %585 = vmatpush.bf16.xpose.msra.mxu0 0
        %586 = vmatpush.bf16.xpose.msra.mxu0 0
        %587 = vmatpush.bf16.xpose.msra.mxu0 0
        %588 = vmatpush.bf16.xpose.msra.mxu0 0
        %589 = vmatpush.bf16.xpose.msra.mxu0 0
        %590 = vmatpush.bf16.xpose.msra.mxu0 %v581
        %591 = vmatmul.bf16.gmra.mxu0 %v578
        %v592 = vpop.f32.mrf.mxu0
        %v593 = vadd.f32 0.0, %v592
        %v594 = vpop.f32.mrf.mxu0
        %v595 = vadd.f32 0.0, %v594
        %596 = vdwg.mxu0
        %v597 = vsel %vm576, %v593, -inf
        %598 = vmax.xlane.f32.xlu0 %v597
        %v599 = vpop.xlane.xlu0 %598
        %v600 = vsel %vm576, %v595, -inf
        %601 = vmax.xlane.f32.xlu0 %v600
        %v602 = vpop.xlane.xlu0 %601
        %v603 = vsub.f32 %v593, %v599
        %v604 = vsub.f32 %v595, %v602
        %v605 = vmul.f32 %v603, 1.442695
        %v606 = vpow.pop %v605
        %v607 = vmul.f32 %v604, 1.442695
        %v608 = vpow.pop %v607
        %v609 = vsel %vm576, %v606, 0.0
        %610 = vadd.xlane.f32.xlu0 %v609
        %v611 = vpop.xlane.xlu0 %610
        %v612 = vsel %vm576, %v608, 0.0
        %613 = vadd.xlane.f32.xlu0 %v612
        %v614 = vpop.xlane.xlu0 %613
        %v615 = vrcp.pop %v611
        %v616 = vrcp.pop %v614
        %v617 = vmul.f32 %v606, %v615
        %v618 = vmul.f32 %v608, %v616
        %v619 = vpack.c.bf16 %v618, %v617
        %620 = vrot.lane.b32.xlu0 %v575, 64
        %v621 = vpop.permute.xlu0 %620
        %v624 = vsel %vm576, %v619, 0
        %626 = vmatpush.bf16.msra.mxu0 0
        %627 = vmatpush.bf16.msra.mxu0 0
        %628 = vmatpush.bf16.msra.mxu0 0
        %629 = vmatpush.bf16.msra.mxu0 0
        %630 = vmatpush.bf16.msra.mxu0 0
        %631 = vmatpush.bf16.msra.mxu0 0
        %632 = vmatpush.bf16.msra.mxu0 0
        %633 = vmatpush.bf16.msra.mxu0 %v621
        %634 = vmatmul.bf16.gmra.mxu0 %v624
        %v635 = vpop.f32.mrf.mxu0
        %v636 = vadd.f32 0.0, %v635
        %v637 = vpop.f32.mrf.mxu0
        %v638 = vadd.f32 0.0, %v637
        %639 = vdwg.mxu0
        %v640 = vpack.c.bf16 %v636, %v636
        %v641 = vpack.c.bf16 %v638, %v638
        %vm642 = vcmask 125952
        %643 = vst.msk [vmem:[#allocation4] sm:$0xf] %vm642, %v640
        %644 = vst.msk [vmem:[#allocation4 + $0x4] sm:$0xf] %vm642, %v641
        %v645 = vld [vmem:[#allocation2] sm:$0xf]
        %v646 = vld [vmem:[#allocation2 + $0x4] sm:$0xf]
        %v647 = vld [vmem:[#allocation3] sm:$0xf]
        %v648 = vld [vmem:[#allocation3 + $0x4] sm:$0xf]
        %v651 = vunpack.c.l.b16 %v645
        %v652 = vunpack.c.l.b16 %v646
        %v653 = vpack.c.b16 %v652, %v651
        %654 = vrot.lane.b32.xlu0 %v653, 112
        %v655 = vpop.permute.xlu0 %654
        %v658 = vunpack.c.l.b16 %v647
        %v659 = vunpack.c.l.b16 %v648
        %v660 = vpack.c.b16 %v659, %v658
        %661 = vrot.lane.b32.xlu0 %v660, 112
        %v662 = vpop.permute.xlu0 %661
        %v664 = vsel %vm576, %v655, 0
        %v667 = vsel %vm576, %v662, 0
        %669 = vmatpush.bf16.xpose.msra.mxu0 0
        %670 = vmatpush.bf16.xpose.msra.mxu0 0
        %671 = vmatpush.bf16.xpose.msra.mxu0 0
        %672 = vmatpush.bf16.xpose.msra.mxu0 0
        %673 = vmatpush.bf16.xpose.msra.mxu0 0
        %674 = vmatpush.bf16.xpose.msra.mxu0 0
        %675 = vmatpush.bf16.xpose.msra.mxu0 0
        %676 = vmatpush.bf16.xpose.msra.mxu0 %v667
        %677 = vmatmul.bf16.gmra.mxu0 %v664
        %v678 = vpop.f32.mrf.mxu0
        %v679 = vadd.f32 0.0, %v678
        %v680 = vpop.f32.mrf.mxu0
        %v681 = vadd.f32 0.0, %v680
        %682 = vdwg.mxu0
        %v683 = vsel %vm576, %v679, -inf
        %684 = vmax.xlane.f32.xlu0 %v683
        %v685 = vpop.xlane.xlu0 %684
        %v686 = vsel %vm576, %v681, -inf
        %687 = vmax.xlane.f32.xlu0 %v686
        %v688 = vpop.xlane.xlu0 %687
        %v689 = vsub.f32 %v679, %v685
        %v690 = vsub.f32 %v681, %v688
        %v691 = vmul.f32 %v689, 1.442695
        %v692 = vpow.pop %v691
        %v693 = vmul.f32 %v690, 1.442695
        %v694 = vpow.pop %v693
        %v695 = vsel %vm576, %v692, 0.0
        %696 = vadd.xlane.f32.xlu0 %v695
        %v697 = vpop.xlane.xlu0 %696
        %v698 = vsel %vm576, %v694, 0.0
        %699 = vadd.xlane.f32.xlu0 %v698
        %v700 = vpop.xlane.xlu0 %699
        %v701 = vrcp.pop %v697
        %v702 = vrcp.pop %v700
        %v703 = vmul.f32 %v692, %v701
        %v704 = vmul.f32 %v694, %v702
        %v705 = vpack.c.bf16 %v704, %v703
        %706 = vrot.lane.b32.xlu0 %v660, 48
        %v707 = vpop.permute.xlu0 %706
        %v710 = vsel %vm576, %v705, 0
        %712 = vmatpush.bf16.msra.mxu0 0
        %713 = vmatpush.bf16.msra.mxu0 0
        %714 = vmatpush.bf16.msra.mxu0 0
        %715 = vmatpush.bf16.msra.mxu0 0
        %716 = vmatpush.bf16.msra.mxu0 0
        %717 = vmatpush.bf16.msra.mxu0 0
        %718 = vmatpush.bf16.msra.mxu0 0
        %719 = vmatpush.bf16.msra.mxu0 %v707
        %720 = vmatmul.bf16.gmra.mxu0 %v710
        %v721 = vpop.f32.mrf.mxu0
        %v722 = vadd.f32 0.0, %v721
        %v723 = vpop.f32.mrf.mxu0
        %v724 = vadd.f32 0.0, %v723
        %725 = vdwg.mxu0
        %v726 = vpack.c.bf16 %v722, %v722
        %v727 = vpack.c.bf16 %v724, %v724
        %730 = vrot.lane.b32.xlu0 %v726, 16
        %v731 = vpop.permute.xlu0 %730
        %732 = vrot.lane.b32.xlu0 %v727, 16
        %v733 = vpop.permute.xlu0 %732
        %vm736 = vcmask 257152
        %737 = vst.msk [vmem:[#allocation4] sm:$0xf] %vm736, %v731
        %738 = vst.msk [vmem:[#allocation4 + $0x4] sm:$0xf] %vm736, %v733
        %v739 = vld [vmem:[#allocation2] sm:$0xf]
        %v740 = vld [vmem:[#allocation2 + $0x4] sm:$0xf]
        %v741 = vld [vmem:[#allocation3] sm:$0xf]
        %v742 = vld [vmem:[#allocation3 + $0x4] sm:$0xf]
        %v745 = vunpack.c.l.b16 %v739
        %v746 = vunpack.c.l.b16 %v740
        %v747 = vpack.c.b16 %v746, %v745
        %748 = vrot.lane.b32.xlu0 %v747, 96
        %v749 = vpop.permute.xlu0 %748
        %v752 = vunpack.c.l.b16 %v741
        %v753 = vunpack.c.l.b16 %v742
        %v754 = vpack.c.b16 %v753, %v752
        %755 = vrot.lane.b32.xlu0 %v754, 96
        %v756 = vpop.permute.xlu0 %755
        %v758 = vsel %vm576, %v749, 0
        %v761 = vsel %vm576, %v756, 0
        %763 = vmatpush.bf16.xpose.msra.mxu0 0
        %764 = vmatpush.bf16.xpose.msra.mxu0 0
        %765 = vmatpush.bf16.xpose.msra.mxu0 0
        %766 = vmatpush.bf16.xpose.msra.mxu0 0
        %767 = vmatpush.bf16.xpose.msra.mxu0 0
        %768 = vmatpush.bf16.xpose.msra.mxu0 0
        %769 = vmatpush.bf16.xpose.msra.mxu0 0
        %770 = vmatpush.bf16.xpose.msra.mxu0 %v761
        %771 = vmatmul.bf16.gmra.mxu0 %v758
        %v772 = vpop.f32.mrf.mxu0
        %v773 = vadd.f32 0.0, %v772
        %v774 = vpop.f32.mrf.mxu0
        %v775 = vadd.f32 0.0, %v774
        %776 = vdwg.mxu0
        %v777 = vsel %vm576, %v773, -inf
        %778 = vmax.xlane.f32.xlu0 %v777
        %v779 = vpop.xlane.xlu0 %778
        %v780 = vsel %vm576, %v775, -inf
        %781 = vmax.xlane.f32.xlu0 %v780
        %v782 = vpop.xlane.xlu0 %781
        %v783 = vsub.f32 %v773, %v779
        %v784 = vsub.f32 %v775, %v782
        %v785 = vmul.f32 %v783, 1.442695
        %v786 = vpow.pop %v785
        %v787 = vmul.f32 %v784, 1.442695
        %v788 = vpow.pop %v787
        %v789 = vsel %vm576, %v786, 0.0
        %790 = vadd.xlane.f32.xlu0 %v789
        %v791 = vpop.xlane.xlu0 %790
        %v792 = vsel %vm576, %v788, 0.0
        %793 = vadd.xlane.f32.xlu0 %v792
        %v794 = vpop.xlane.xlu0 %793
        %v795 = vrcp.pop %v791
        %v796 = vrcp.pop %v794
        %v797 = vmul.f32 %v786, %v795
        %v798 = vmul.f32 %v788, %v796
        %v799 = vpack.c.bf16 %v798, %v797
        %800 = vrot.lane.b32.xlu0 %v754, 32
        %v801 = vpop.permute.xlu0 %800
        %v804 = vsel %vm576, %v799, 0
        %806 = vmatpush.bf16.msra.mxu0 0
        %807 = vmatpush.bf16.msra.mxu0 0
        %808 = vmatpush.bf16.msra.mxu0 0
        %809 = vmatpush.bf16.msra.mxu0 0
        %810 = vmatpush.bf16.msra.mxu0 0
        %811 = vmatpush.bf16.msra.mxu0 0
        %812 = vmatpush.bf16.msra.mxu0 0
        %813 = vmatpush.bf16.msra.mxu0 %v801
        %814 = vmatmul.bf16.gmra.mxu0 %v804
        %v815 = vpop.f32.mrf.mxu0
        %v816 = vadd.f32 0.0, %v815
        %v817 = vpop.f32.mrf.mxu0
        %v818 = vadd.f32 0.0, %v817
        %819 = vdwg.mxu0
        %v820 = vpack.c.bf16 %v816, %v816
        %v821 = vpack.c.bf16 %v818, %v818
        %824 = vrot.lane.b32.xlu0 %v820, 32
        %v825 = vpop.permute.xlu0 %824
        %826 = vrot.lane.b32.xlu0 %v821, 32
        %v827 = vpop.permute.xlu0 %826
        %vm830 = vcmask 388352
        %831 = vst.msk [vmem:[#allocation4] sm:$0xf] %vm830, %v825
        %832 = vst.msk [vmem:[#allocation4 + $0x4] sm:$0xf] %vm830, %v827
        %v833 = vld [vmem:[#allocation2] sm:$0xf]
        %v834 = vld [vmem:[#allocation2 + $0x4] sm:$0xf]
        %v835 = vld [vmem:[#allocation3] sm:$0xf]
        %v836 = vld [vmem:[#allocation3 + $0x4] sm:$0xf]
        %v839 = vunpack.c.l.b16 %v833
        %v840 = vunpack.c.l.b16 %v834
        %v841 = vpack.c.b16 %v840, %v839
        %842 = vrot.lane.b32.xlu0 %v841, 80
        %v843 = vpop.permute.xlu0 %842
        %v846 = vunpack.c.l.b16 %v835
        %v847 = vunpack.c.l.b16 %v836
        %v848 = vpack.c.b16 %v847, %v846
        %849 = vrot.lane.b32.xlu0 %v848, 80
        %v850 = vpop.permute.xlu0 %849
        %v852 = vsel %vm576, %v843, 0
        %v855 = vsel %vm576, %v850, 0
        %857 = vmatpush.bf16.xpose.msra.mxu0 0
        %858 = vmatpush.bf16.xpose.msra.mxu0 0
        %859 = vmatpush.bf16.xpose.msra.mxu0 0
        %860 = vmatpush.bf16.xpose.msra.mxu0 0
        %861 = vmatpush.bf16.xpose.msra.mxu0 0
        %862 = vmatpush.bf16.xpose.msra.mxu0 0
        %863 = vmatpush.bf16.xpose.msra.mxu0 0
        %864 = vmatpush.bf16.xpose.msra.mxu0 %v855
        %865 = vmatmul.bf16.gmra.mxu0 %v852
        %v866 = vpop.f32.mrf.mxu0
        %v867 = vadd.f32 0.0, %v866
        %v868 = vpop.f32.mrf.mxu0
        %v869 = vadd.f32 0.0, %v868
        %870 = vdwg.mxu0
        %v871 = vsel %vm576, %v867, -inf
        %872 = vmax.xlane.f32.xlu0 %v871
        %v873 = vpop.xlane.xlu0 %872
        %v874 = vsel %vm576, %v869, -inf
        %875 = vmax.xlane.f32.xlu0 %v874
        %v876 = vpop.xlane.xlu0 %875
        %v877 = vsub.f32 %v867, %v873
        %v878 = vsub.f32 %v869, %v876
        %v879 = vmul.f32 %v877, 1.442695
        %v880 = vpow.pop %v879
        %v881 = vmul.f32 %v878, 1.442695
        %v882 = vpow.pop %v881
        %v883 = vsel %vm576, %v880, 0.0
        %884 = vadd.xlane.f32.xlu0 %v883
        %v885 = vpop.xlane.xlu0 %884
        %v886 = vsel %vm576, %v882, 0.0
        %887 = vadd.xlane.f32.xlu0 %v886
        %v888 = vpop.xlane.xlu0 %887
        %v889 = vrcp.pop %v885
        %v890 = vrcp.pop %v888
        %v891 = vmul.f32 %v880, %v889
        %v892 = vmul.f32 %v882, %v890
        %v893 = vpack.c.bf16 %v892, %v891
        %894 = vrot.lane.b32.xlu0 %v848, 16
        %v895 = vpop.permute.xlu0 %894
        %v898 = vsel %vm576, %v893, 0
        %900 = vmatpush.bf16.msra.mxu0 0
        %901 = vmatpush.bf16.msra.mxu0 0
        %902 = vmatpush.bf16.msra.mxu0 0
        %903 = vmatpush.bf16.msra.mxu0 0
        %904 = vmatpush.bf16.msra.mxu0 0
        %905 = vmatpush.bf16.msra.mxu0 0
        %906 = vmatpush.bf16.msra.mxu0 0
        %907 = vmatpush.bf16.msra.mxu0 %v895
        %908 = vmatmul.bf16.gmra.mxu0 %v898
        %v909 = vpop.f32.mrf.mxu0
        %v910 = vadd.f32 0.0, %v909
        %v911 = vpop.f32.mrf.mxu0
        %v912 = vadd.f32 0.0, %v911
        %913 = vdwg.mxu0
        %v914 = vpack.c.bf16 %v910, %v910
        %v915 = vpack.c.bf16 %v912, %v912
        %918 = vrot.lane.b32.xlu0 %v914, 48
        %v919 = vpop.permute.xlu0 %918
        %920 = vrot.lane.b32.xlu0 %v915, 48
        %v921 = vpop.permute.xlu0 %920
        %vm924 = vcmask 519552
        %925 = vst.msk [vmem:[#allocation4] sm:$0xf] %vm924, %v919
        %926 = vst.msk [vmem:[#allocation4 + $0x4] sm:$0xf] %vm924, %v921
        %v927 = vld [vmem:[#allocation4] sm:$0xf]
        %v928 = vld [vmem:[#allocation4 + $0x4] sm:$0xf]
        %v929 = vld [vmem:[#allocation13] sm:$0xf]
        %v930 = vld [vmem:[#allocation13 + $0x4] sm:$0xf]
        %v931 = vld [vmem:[#allocation13 + $0x8] sm:$0xf]
        %v932 = vld [vmem:[#allocation13 + $0xc] sm:$0xf]
        %v933 = vld [vmem:[#allocation13 + $0x10] sm:$0xf]
        %v934 = vld [vmem:[#allocation13 + $0x14] sm:$0xf]
        %v935 = vld [vmem:[#allocation13 + $0x18] sm:$0xf]
        %v936 = vld [vmem:[#allocation13 + $0x1c] sm:$0xf]
        %v937 = vld [vmem:[%s6] sm:$0x1]
        %v939 = vperm.slane %v937, 0
        %v943 = vunpack.c.l.b16 %v927
        %v944 = vunpack.c.l.b16 %v928
        %v945 = vpack.c.b16 %v944, %v943
        %v954 = vunpack.c.l.b16 %v929
        %v955 = vunpack.c.l.b16 %v930
        %v956 = vunpack.c.l.b16 %v931
        %v957 = vunpack.c.l.b16 %v932
        %v958 = vunpack.c.l.b16 %v933
        %v959 = vunpack.c.l.b16 %v934
        %v960 = vunpack.c.l.b16 %v935
        %v961 = vunpack.c.l.b16 %v936
        %v962 = vpack.c.b16 %v955, %v954
        %v963 = vpack.c.b16 %v957, %v956
        %v964 = vpack.c.b16 %v959, %v958
        %v965 = vpack.c.b16 %v961, %v960
        %v971 = vsel %vm395, %v945, 0
        %973 = vmatpush.bf16.msra.mxu0 0
        %974 = vmatpush.bf16.msra.mxu0 0
        %975 = vmatpush.bf16.msra.mxu0 0
        %976 = vmatpush.bf16.msra.mxu0 0
        %977 = vmatpush.bf16.msra.mxu0 %v965
        %978 = vmatpush.bf16.msra.mxu0 %v964
        %979 = vmatpush.bf16.msra.mxu0 %v963
        %980 = vmatpush.bf16.msra.mxu0 %v962
        %981 = vmatmul.bf16.gmra.mxu0 %v971
        %v982 = vpop.f32.mrf.mxu0
        %v983 = vadd.f32 %v939, %v982
        %v984 = vpop.f32.mrf.mxu0
        %v985 = vadd.f32 %v939, %v984
        %986 = vdwg.mxu0
        %v987 = vld [vmem:[%s7] sm:$0x1]
        %v989 = vperm.slane %v987, 0
        %v991 = vmul.f32 %v983, %v989
        %v992 = vmul.f32 %v985, %v989
        %v993 = vadd.f32 %v391, %v991
        %v994 = vadd.f32 %v392, %v992
        %995 = vst.msk [vmem:[%s389] sm:$0xff] %vm395, %v993
        %996 = vst.msk [vmem:[%s389 + $0x8] sm:$0xff] %vm395, %v994
        %s997 = sand.u32 %s208, 1
        %s998 = scalar_lea.sflag [#allocation7], %s997
        %s999 = sand.u32 %s208, 1
        %s1000 = smul.addr %s999, 16
        %s1001 = scalar_lea.vmem [#allocation14], %s1000
        // Predicated region
        $region73: #{tpu_custom_call.1} parent=51 // pred_check
          %p1002 = pneg %p218
        $region74: #{tpu_custom_call.1} parent=51 // pred_check_branch
          %1004 = sbr.rel (%p1002) target = $region76
        $region75: #{tpu_custom_call.1} parent=51 // pred_region
          %1006 = vsyncadd %s998, 0
          %s1007 = smul.addr %s27, 2
          %s1008 = smul.addr %s1007, 8
          %s1009 = scalar_lea.hbm %s8, %s1008
          %s1010 = sshll.u32 %s1001, 4
          %s1011 = int_to_ptr.vmem [resolvable:$true] %s1010
          %s1012 = sshll.u32 %s1009, 4
          %s1013 = int_to_ptr.hbm [resolvable:$true] %s1012
          %1018 = dma.vmem_to_hbm [thread:$0]  %s1011, 256, %s1013, %s998, 128, 128, 8
        $region76: #{tpu_custom_call.1} parent=51 // pred_fallthru
          _
      $region52: #{tpu_custom_call.1} parent=5 // pred_fallthru
        _
      %p1019 = scmp.le.s32.totalorder 2, %s22
      // Predicated region
      $region77: #{tpu_custom_call.1} parent=5 // pred_check
        %p1020 = pneg %p1019
      $region78: #{tpu_custom_call.1} parent=5 // pred_check_branch
        %1022 = sbr.rel (%p1020) target = $region80
      $region79: #{tpu_custom_call.1} parent=5 // pred_region
        %s1023 = ssub.s32 %s22, 2
        // Predicated region
        $region81: #{tpu_custom_call.1} parent=79 // pred_check
          %p1024 = pneg %p224
        $region82: #{tpu_custom_call.1} parent=79 // pred_check_branch
          %1026 = sbr.rel (%p1024) target = $region84
        $region83: #{tpu_custom_call.1} parent=79 // pred_region
          %s1027 = sand.u32 %s209, 1
          %s1028 = scalar_lea.sflag [#allocation7], %s1027
          %s1029 = sand.u32 %s209, 1
          %s1030 = smul.addr %s1029, 16
          %s1031 = scalar_lea.vmem [#allocation14], %s1030
          %1033 = dma.done %s1028, 256
        $region84: #{tpu_custom_call.1} parent=79 // pred_fallthru
          _
      $region80: #{tpu_custom_call.1} parent=5 // pred_fallthru
        _
    $region6: #{tpu_custom_call.1} parent=1 // loop_footer
      %s26 = sadd.s32 1, %s22
    $region7: #{tpu_custom_call.1} parent=1 // loop_footer_branch
      %21 = sbr.rel target = $region3
    $region8: #{tpu_custom_call.1} parent=1 // loop_exit
      _
    %1034 = vsyncpa [#allocation6], 1
    %s1035 = scalar_lea.sflag [#allocation6], 1
    %1036 = vsyncpa %s1035, 1
    %1037 = vsyncpa [#allocation9], 1
    %1038 = vsyncpa [#allocation12], 1
    %1039 = vsyncpa [#allocation7], 1
    %s1040 = scalar_lea.sflag [#allocation7], 1
    %1041 = vsyncpa %s1040, 1

// kernel: tpu_custom_call.1
$region0: #{tpu_custom_call.1}
  #allocation0 [shape = 'u32[]', space=smem, size = 0x4, offset = 0x4, fixed_abs, tag = 'smem constant byte address 0x4 - core index']
  #allocation1 [shape = 'u32[72,128]{1,0:T(1,128)}', space=vmem, size = 0x9000, scoped, tag = 'internal scratch']
  #allocation2 [shape = 'bf16[16,64]{1,0:T(8,128)(2,1)}', space=vmem, size = 0x1000, scoped, tag = 'scratch operand']
  #allocation3 [shape = 'bf16[16,128]{1,0:T(8,128)(2,1)}', space=vmem, size = 0x1000, scoped, tag = 'scratch operand']
  #allocation4 [shape = 'bf16[16,64]{1,0:T(8,128)(2,1)}', space=vmem, size = 0x1000, scoped, tag = 'scratch operand']
  %s0 = inlined_call_operand.hbm [shape: f32[2,16,64], index: 0, kind: input, shape index: {}]
  %s1 = inlined_call_operand.hbm [shape: f32[1,64], index: 1, kind: input, shape index: {}]
  %s2 = inlined_call_operand.vmem [shape: f32[1,64], index: 2, kind: input, shape index: {}]
  %s3 = inlined_call_operand.hbm [shape: bf16[64,64], index: 3, kind: input, shape index: {}]
  %s4 = inlined_call_operand.hbm [shape: bf16[64,128], index: 4, kind: input, shape index: {}]
  %s5 = inlined_call_operand.hbm [shape: bf16[64,64], index: 5, kind: input, shape index: {}]
  %s6 = inlined_call_operand.vmem [shape: f32[1,64], index: 6, kind: input, shape index: {}]
  %s7 = inlined_call_operand.vmem [shape: f32[1,64], index: 7, kind: input, shape index: {}]
  %s8 = inlined_call_operand.hbm [shape: f32[2,16,64], index: 8, kind: output, shape index: {}]
  %s9 = sld [smem:[#allocation0]]
  $region85: #{tpu_custom_call.1} parent=0
    _
  %s11 = ssub.s32 1, %s9
  %s12 = scalar_select 0, %s11, %s9
  $region1: #{tpu_custom_call.1} parent=0
    #allocation5 [shape = 'u8[16384]{0}', space=vmem, size = 0x4000, scoped, tag = 'input window, operand 0']
    #allocation6 [shape = 's32[2]{0}', space=sflag, size = 0x8, scoped, tag = 'scoped memory for tpu_custom_call.1']
    #allocation7 [shape = 's32[2]{0}', space=sflag, size = 0x8, scoped, tag = 'scoped memory for tpu_custom_call.1']
    #allocation8 [shape = 'u8[512]{0}', space=vmem, size = 0x400, scoped, tag = 'input window, operand 1, single buffered']
    #allocation9 [shape = 's32[1]{0}', space=sflag, size = 0x4, scoped, tag = 'scoped memory for tpu_custom_call.1']
    #allocation10 [shape = 'u8[16384]{0}', space=vmem, size = 0x4000, scoped, tag = 'input window, operand 3, single buffered']
    #allocation11 [shape = 'u8[16384]{0}', space=vmem, size = 0x4000, scoped, tag = 'input window, operand 4, single buffered']
    #allocation12 [shape = 's32[1]{0}', space=sflag, size = 0x4, scoped, tag = 'scoped memory for tpu_custom_call.1']
    #allocation13 [shape = 'u8[16384]{0}', space=vmem, size = 0x4000, scoped, tag = 'input window, operand 5, single buffered']
    #allocation14 [shape = 'u8[16384]{0}', space=vmem, size = 0x4000, scoped, tag = 'output window, operand 0']
    %13 = vsyncpa [#allocation6], 0
    %s14 = scalar_lea.sflag [#allocation6], 1
    %15 = vsyncpa %s14, 0
    %16 = vsyncpa [#allocation9], 0
    %17 = vsyncpa [#allocation12], 0
    %18 = vsyncpa [#allocation7], 0
    %s19 = scalar_lea.sflag [#allocation7], 1
    %20 = vsyncpa %s19, 0
    loop: start=0, step=1, limit=4
    $region2: #{tpu_custom_call.1} parent=1 // loop_pre_header
      _
    $region3: #{tpu_custom_call.1} parent=1 // loop_header
      %s22 = sphi 0, %s26
      %p23 = scmp.ge.s32.totalorder %s22, 4
      %s32 = sphi 0, %s34
      %s35 = sphi 0, %s32
      %s36 = sphi 0, %s35
      %s52 = sphi 0, %s36
      %s56 = sphi 0, %s56
      %s58 = sphi 0, %s56
      %s59 = sphi 0, %s58
      %s73 = sphi 0, %s59
      %s77 = sphi 0, %s77
      %s79 = sphi 0, %s77
      %s80 = sphi 0, %s79
      %s94 = sphi 0, %s80
      %s98 = sphi 0, %s98
      %s100 = sphi 0, %s98
      %s101 = sphi 0, %s100
      %s115 = sphi 0, %s101
      %s119 = sphi 0, %s119
      %s121 = sphi 0, %s119
      %s122 = sphi 0, %s121
      %s136 = sphi 0, %s122
      %s140 = sphi 0, %s140
      %s142 = sphi 0, %s140
      %s143 = sphi 0, %s142
      %s157 = sphi 0, %s143
      %s161 = sphi 0, %s161
      %s163 = sphi 0, %s161
      %s164 = sphi 0, %s163
      %s178 = sphi 0, %s164
      %s182 = sphi 0, %s182
      %s184 = sphi 0, %s182
      %s185 = sphi 0, %s184
      %s199 = sphi 0, %s185
      %s205 = sphi 0, %s207
      %s208 = sphi 0, %s205
      %s209 = sphi 0, %s208
      %s225 = sphi 0, %s209
    $region4: #{tpu_custom_call.1} parent=1 // loop_header_branch
      %25 = sbr.rel (%p23) target = $region8
    $region5: #{tpu_custom_call.1} parent=1 // loop_body
      %s27 = ssub.s32 %s22, 1
      %s28 = ssub.s32 %s22, 2
      %s29 = sadd.s32 %s22, 1
      %s30 = ssub.s32 %s22, %s29
      %p31 = scmp.eq.s32.totalorder %s30, 0
      %s33 = sadd.s32 %s32, 1
      %s34 = scalar_select %p31, %s32, %s33
      %p37 = pneg %p31
      %p38 = scmp.eq.s32.totalorder %s22, 1
      %p39 = por %p37, %p38
      %p40 = scmp.ne.s32.totalorder %s32, %s35
      %p41 = scmp.eq.s32.totalorder %s22, 0
      %p42 = por %p40, %p41
      %p43 = scmp.ne.s32.totalorder %s32, %s35
      %p44 = scmp.eq.s32.totalorder %s27, 1
      %p45 = por %p43, %p44
      %p46 = scmp.ne.s32.totalorder %s35, %s36
      %p47 = scmp.eq.s32.totalorder %s27, 0
      %p48 = por %p46, %p47
      %p49 = scmp.ne.s32.totalorder %s35, %s36
      %p50 = scmp.eq.s32.totalorder %s28, 1
      %p51 = por %p49, %p50
      %p53 = scmp.ne.s32.totalorder %s36, %s52
      %p54 = scmp.eq.s32.totalorder %s28, 0
      %p55 = por %p53, %p54
      %s57 = sadd.s32 %s56, 1
      %p60 = scmp.eq.s32.totalorder %s22, 1
      %p61 = scmp.ne.s32.totalorder %s56, %s58
      %p62 = scmp.eq.s32.totalorder %s22, 0
      %p63 = por %p61, %p62
      %p64 = scmp.ne.s32.totalorder %s56, %s58
      %p65 = scmp.eq.s32.totalorder %s27, 1
      %p66 = por %p64, %p65
      %p67 = scmp.ne.s32.totalorder %s58, %s59
      %p68 = scmp.eq.s32.totalorder %s27, 0
      %p69 = por %p67, %p68
      %p70 = scmp.ne.s32.totalorder %s58, %s59
      %p71 = scmp.eq.s32.totalorder %s28, 1
      %p72 = por %p70, %p71
      %p74 = scmp.ne.s32.totalorder %s59, %s73
      %p75 = scmp.eq.s32.totalorder %s28, 0
      %p76 = por %p74, %p75
      %s78 = sadd.s32 %s77, 1
      %p81 = scmp.eq.s32.totalorder %s22, 1
      %p82 = scmp.ne.s32.totalorder %s77, %s79
      %p83 = scmp.eq.s32.totalorder %s22, 0
      %p84 = por %p82, %p83
      %p85 = scmp.ne.s32.totalorder %s77, %s79
      %p86 = scmp.eq.s32.totalorder %s27, 1
      %p87 = por %p85, %p86
      %p88 = scmp.ne.s32.totalorder %s79, %s80
      %p89 = scmp.eq.s32.totalorder %s27, 0
      %p90 = por %p88, %p89
      %p91 = scmp.ne.s32.totalorder %s79, %s80
      %p92 = scmp.eq.s32.totalorder %s28, 1
      %p93 = por %p91, %p92
      %p95 = scmp.ne.s32.totalorder %s80, %s94
      %p96 = scmp.eq.s32.totalorder %s28, 0
      %p97 = por %p95, %p96
      %s99 = sadd.s32 %s98, 1
      %p102 = scmp.eq.s32.totalorder %s22, 1
      %p103 = scmp.ne.s32.totalorder %s98, %s100
      %p104 = scmp.eq.s32.totalorder %s22, 0
      %p105 = por %p103, %p104
      %p106 = scmp.ne.s32.totalorder %s98, %s100
      %p107 = scmp.eq.s32.totalorder %s27, 1
      %p108 = por %p106, %p107
      %p109 = scmp.ne.s32.totalorder %s100, %s101
      %p110 = scmp.eq.s32.totalorder %s27, 0
      %p111 = por %p109, %p110
      %p112 = scmp.ne.s32.totalorder %s100, %s101
      %p113 = scmp.eq.s32.totalorder %s28, 1
      %p114 = por %p112, %p113
      %p116 = scmp.ne.s32.totalorder %s101, %s115
      %p117 = scmp.eq.s32.totalorder %s28, 0
      %p118 = por %p116, %p117
      %s120 = sadd.s32 %s119, 1
      %p123 = scmp.eq.s32.totalorder %s22, 1
      %p124 = scmp.ne.s32.totalorder %s119, %s121
      %p125 = scmp.eq.s32.totalorder %s22, 0
      %p126 = por %p124, %p125
      %p127 = scmp.ne.s32.totalorder %s119, %s121
      %p128 = scmp.eq.s32.totalorder %s27, 1
      %p129 = por %p127, %p128
      %p130 = scmp.ne.s32.totalorder %s121, %s122
      %p131 = scmp.eq.s32.totalorder %s27, 0
      %p132 = por %p130, %p131
      %p133 = scmp.ne.s32.totalorder %s121, %s122
      %p134 = scmp.eq.s32.totalorder %s28, 1
      %p135 = por %p133, %p134
      %p137 = scmp.ne.s32.totalorder %s122, %s136
      %p138 = scmp.eq.s32.totalorder %s28, 0
      %p139 = por %p137, %p138
      %s141 = sadd.s32 %s140, 1
      %p144 = scmp.eq.s32.totalorder %s22, 1
      %p145 = scmp.ne.s32.totalorder %s140, %s142
      %p146 = scmp.eq.s32.totalorder %s22, 0
      %p147 = por %p145, %p146
      %p148 = scmp.ne.s32.totalorder %s140, %s142
      %p149 = scmp.eq.s32.totalorder %s27, 1
      %p150 = por %p148, %p149
      %p151 = scmp.ne.s32.totalorder %s142, %s143
      %p152 = scmp.eq.s32.totalorder %s27, 0
      %p153 = por %p151, %p152
      %p154 = scmp.ne.s32.totalorder %s142, %s143
      %p155 = scmp.eq.s32.totalorder %s28, 1
      %p156 = por %p154, %p155
      %p158 = scmp.ne.s32.totalorder %s143, %s157
      %p159 = scmp.eq.s32.totalorder %s28, 0
      %p160 = por %p158, %p159
      %s162 = sadd.s32 %s161, 1
      %p165 = scmp.eq.s32.totalorder %s22, 1
      %p166 = scmp.ne.s32.totalorder %s161, %s163
      %p167 = scmp.eq.s32.totalorder %s22, 0
      %p168 = por %p166, %p167
      %p169 = scmp.ne.s32.totalorder %s161, %s163
      %p170 = scmp.eq.s32.totalorder %s27, 1
      %p171 = por %p169, %p170
      %p172 = scmp.ne.s32.totalorder %s163, %s164
      %p173 = scmp.eq.s32.totalorder %s27, 0
      %p174 = por %p172, %p173
      %p175 = scmp.ne.s32.totalorder %s163, %s164
      %p176 = scmp.eq.s32.totalorder %s28, 1
      %p177 = por %p175, %p176
      %p179 = scmp.ne.s32.totalorder %s164, %s178
      %p180 = scmp.eq.s32.totalorder %s28, 0
      %p181 = por %p179, %p180
      %s183 = sadd.s32 %s182, 1
      %p186 = scmp.eq.s32.totalorder %s22, 1
      %p187 = scmp.ne.s32.totalorder %s182, %s184
      %p188 = scmp.eq.s32.totalorder %s22, 0
      %p189 = por %p187, %p188
      %p190 = scmp.ne.s32.totalorder %s182, %s184
      %p191 = scmp.eq.s32.totalorder %s27, 1
      %p192 = por %p190, %p191
      %p193 = scmp.ne.s32.totalorder %s184, %s185
      %p194 = scmp.eq.s32.totalorder %s27, 0
      %p195 = por %p193, %p194
      %p196 = scmp.ne.s32.totalorder %s184, %s185
      %p197 = scmp.eq.s32.totalorder %s28, 1
      %p198 = por %p196, %p197
      %p200 = scmp.ne.s32.totalorder %s185, %s199
      %p201 = scmp.eq.s32.totalorder %s28, 0
      %p202 = por %p200, %p201
      %s203 = ssub.s32 %s22, %s29
      %p204 = scmp.eq.s32.totalorder %s203, 0
      %s206 = sadd.s32 %s205, 1
      %s207 = scalar_select %p204, %s205, %s206
      %p210 = pneg %p204
      %p211 = scmp.eq.s32.totalorder %s22, 1
      %p212 = por %p210, %p211
      %p213 = scmp.ne.s32.totalorder %s205, %s208
      %p214 = scmp.eq.s32.totalorder %s22, 0
      %p215 = por %p213, %p214
      %p216 = scmp.ne.s32.totalorder %s205, %s208
      %p217 = scmp.eq.s32.totalorder %s27, 1
      %p218 = por %p216, %p217
      %p219 = scmp.ne.s32.totalorder %s208, %s209
      %p220 = scmp.eq.s32.totalorder %s27, 0
      %p221 = por %p219, %p220
      %p222 = scmp.ne.s32.totalorder %s208, %s209
      %p223 = scmp.eq.s32.totalorder %s28, 1
      %p224 = por %p222, %p223
      %p226 = scmp.ne.s32.totalorder %s209, %s225
      %p227 = scmp.eq.s32.totalorder %s28, 0
      %p228 = por %p226, %p227
      %p229 = scmp.le.s32.totalorder 1, %s22
      %p230 = scmp.lt.s32.totalorder %s22, 3
      %p231 = pnand %p229, %p230
      %p232 = pneg %p231
      // Predicated region
      $region9: #{tpu_custom_call.1} parent=5 // pred_check
        _
      $region10: #{tpu_custom_call.1} parent=5 // pred_check_branch
        %234 = sbr.rel (%p231) target = $region12
      $region11: #{tpu_custom_call.1} parent=5 // pred_region
        %s235 = ssub.s32 %s22, 1
        // Predicated region
        $region13: #{tpu_custom_call.1} parent=11 // pred_check
          %p236 = pneg %p69
        $region14: #{tpu_custom_call.1} parent=11 // pred_check_branch
          %238 = sbr.rel (%p236) target = $region16
        $region15: #{tpu_custom_call.1} parent=11 // pred_region
          %240 = vsyncadd [#allocation9], 0
          %s242 = sshll.u32 %s1, 4
          %s243 = int_to_ptr.hbm [resolvable:$true] %s242
          %s244 = sshll.u32 [#allocation8], 4
          %s245 = int_to_ptr.vmem [resolvable:$true] %s244
          %247 = dma.hbm_to_vmem [thread:$0]  %s243, 16, %s245, [#allocation9]
        $region16: #{tpu_custom_call.1} parent=11 // pred_fallthru
          _
        // Predicated region
        $region17: #{tpu_custom_call.1} parent=11 // pred_check
          %p248 = pneg %p90
        $region18: #{tpu_custom_call.1} parent=11 // pred_check_branch
          %250 = sbr.rel (%p248) target = $region20
        $region19: #{tpu_custom_call.1} parent=11 // pred_region
          _
        $region20: #{tpu_custom_call.1} parent=11 // pred_fallthru
          _
        // Predicated region
        $region21: #{tpu_custom_call.1} parent=11 // pred_check
          %p251 = pneg %p111
        $region22: #{tpu_custom_call.1} parent=11 // pred_check_branch
          %253 = sbr.rel (%p251) target = $region24
        $region23: #{tpu_custom_call.1} parent=11 // pred_region
          %255 = vsyncadd [#allocation9], 0
          %s256 = sshll.u32 %s3, 4
          %s257 = int_to_ptr.hbm [resolvable:$true] %s256
          %s258 = sshll.u32 [#allocation10], 4
          %s259 = int_to_ptr.vmem [resolvable:$true] %s258
          %264 = dma.hbm_to_vmem [thread:$0]  %s257, 512, %s259, [#allocation9], 64, 64, 4
        $region24: #{tpu_custom_call.1} parent=11 // pred_fallthru
          _
        // Predicated region
        $region25: #{tpu_custom_call.1} parent=11 // pred_check
          %p265 = pneg %p132
        $region26: #{tpu_custom_call.1} parent=11 // pred_check_branch
          %267 = sbr.rel (%p265) target = $region28
        $region27: #{tpu_custom_call.1} parent=11 // pred_region
          %269 = vsyncadd [#allocation12], 0
          %s270 = sshll.u32 %s4, 4
          %s271 = int_to_ptr.hbm [resolvable:$true] %s270
          %s272 = sshll.u32 [#allocation11], 4
          %s273 = int_to_ptr.vmem [resolvable:$true] %s272
          %278 = dma.hbm_to_vmem [thread:$0]  %s271, 512, %s273, [#allocation12], 64, 64, 4
        $region28: #{tpu_custom_call.1} parent=11 // pred_fallthru
          _
        // Predicated region
        $region29: #{tpu_custom_call.1} parent=11 // pred_check
          %p279 = pneg %p153
        $region30: #{tpu_custom_call.1} parent=11 // pred_check_branch
          %281 = sbr.rel (%p279) target = $region32
        $region31: #{tpu_custom_call.1} parent=11 // pred_region
          %283 = vsyncadd [#allocation12], 0
          %s284 = sshll.u32 %s5, 4
          %s285 = int_to_ptr.hbm [resolvable:$true] %s284
          %s286 = sshll.u32 [#allocation13], 4
          %s287 = int_to_ptr.vmem [resolvable:$true] %s286
          %292 = dma.hbm_to_vmem [thread:$0]  %s285, 512, %s287, [#allocation12], 64, 64, 4
        $region32: #{tpu_custom_call.1} parent=11 // pred_fallthru
          _
        // Predicated region
        $region33: #{tpu_custom_call.1} parent=11 // pred_check
          %p293 = pneg %p174
        $region34: #{tpu_custom_call.1} parent=11 // pred_check_branch
          %295 = sbr.rel (%p293) target = $region36
        $region35: #{tpu_custom_call.1} parent=11 // pred_region
          _
        $region36: #{tpu_custom_call.1} parent=11 // pred_fallthru
          _
        // Predicated region
        $region37: #{tpu_custom_call.1} parent=11 // pred_check
          %p296 = pneg %p195
        $region38: #{tpu_custom_call.1} parent=11 // pred_check_branch
          %298 = sbr.rel (%p296) target = $region40
        $region39: #{tpu_custom_call.1} parent=11 // pred_region
          _
        $region40: #{tpu_custom_call.1} parent=11 // pred_fallthru
          _
      $region12: #{tpu_custom_call.1} parent=5 // pred_fallthru
        _
      %p299 = scmp.lt.s32.totalorder %s22, 2
      // Predicated region
      $region41: #{tpu_custom_call.1} parent=5 // pred_check
        %p300 = pneg %p299
      $region42: #{tpu_custom_call.1} parent=5 // pred_check_branch
        %302 = sbr.rel (%p300) target = $region44
      $region43: #{tpu_custom_call.1} parent=5 // pred_region
        // Predicated region
        $region45: #{tpu_custom_call.1} parent=43 // pred_check
          %p303 = pneg %p42
        $region46: #{tpu_custom_call.1} parent=43 // pred_check_branch
          %305 = sbr.rel (%p303) target = $region48
        $region47: #{tpu_custom_call.1} parent=43 // pred_region
          %s306 = sand.u32 %s32, 1
          %s307 = scalar_lea.sflag [#allocation6], %s306
          %s308 = sand.u32 %s32, 1
          %s309 = smul.addr %s308, 16
          %s310 = scalar_lea.vmem [#allocation5], %s309
          %312 = vsyncadd %s307, 0
          %s313 = smul.addr %s22, 2
          %s314 = smul.addr %s313, 8
          %s315 = scalar_lea.hbm %s0, %s314
          %s316 = sshll.u32 %s315, 4
          %s317 = int_to_ptr.hbm [resolvable:$true] %s316
          %s318 = sshll.u32 %s310, 4
          %s319 = int_to_ptr.vmem [resolvable:$true] %s318
          %324 = dma.hbm_to_vmem [thread:$0]  %s317, 256, %s319, %s307, 128, 128, 8
        $region48: #{tpu_custom_call.1} parent=43 // pred_fallthru
          _
      $region44: #{tpu_custom_call.1} parent=5 // pred_fallthru
        _
      %p325 = scmp.le.s32.totalorder 1, %s22
      %p326 = scmp.lt.s32.totalorder %s22, 3
      %p327 = pnand %p325, %p326
      %p328 = pneg %p327
      // Predicated region
      $region49: #{tpu_custom_call.1} parent=5 // pred_check
        _
      $region50: #{tpu_custom_call.1} parent=5 // pred_check_branch
        %330 = sbr.rel (%p327) target = $region52
      $region51: #{tpu_custom_call.1} parent=5 // pred_region
        %s331 = ssub.s32 %s22, 1
        %s332 = sand.u32 %s35, 1
        %s333 = scalar_lea.sflag [#allocation6], %s332
        %s334 = sand.u32 %s35, 1
        %s335 = smul.addr %s334, 16
        %s336 = scalar_lea.vmem [#allocation5], %s335
        // Predicated region
        $region53: #{tpu_custom_call.1} parent=51 // pred_check
          %p337 = pneg %p48
        $region54: #{tpu_custom_call.1} parent=51 // pred_check_branch
          %339 = sbr.rel (%p337) target = $region56
        $region55: #{tpu_custom_call.1} parent=51 // pred_region
          %341 = dma.done %s333, 256
        $region56: #{tpu_custom_call.1} parent=51 // pred_fallthru
          _
        // Predicated region
        $region57: #{tpu_custom_call.1} parent=51 // pred_check
          %p342 = pneg %p69
        $region58: #{tpu_custom_call.1} parent=51 // pred_check_branch
          %344 = sbr.rel (%p342) target = $region60
        $region59: #{tpu_custom_call.1} parent=51 // pred_region
          %346 = dma.done [#allocation9], 16
        $region60: #{tpu_custom_call.1} parent=51 // pred_fallthru
          _
        // Predicated region
        $region61: #{tpu_custom_call.1} parent=51 // pred_check
          %p347 = pneg %p111
        $region62: #{tpu_custom_call.1} parent=51 // pred_check_branch
          %349 = sbr.rel (%p347) target = $region64
        $region63: #{tpu_custom_call.1} parent=51 // pred_region
          %351 = dma.done [#allocation9], 512
        $region64: #{tpu_custom_call.1} parent=51 // pred_fallthru
          _
        // Predicated region
        $region65: #{tpu_custom_call.1} parent=51 // pred_check
          %p352 = pneg %p132
        $region66: #{tpu_custom_call.1} parent=51 // pred_check_branch
          %354 = sbr.rel (%p352) target = $region68
        $region67: #{tpu_custom_call.1} parent=51 // pred_region
          %356 = dma.done [#allocation12], 512
        $region68: #{tpu_custom_call.1} parent=51 // pred_fallthru
          _
        // Predicated region
        $region69: #{tpu_custom_call.1} parent=51 // pred_check
          %p357 = pneg %p153
        $region70: #{tpu_custom_call.1} parent=51 // pred_check_branch
          %359 = sbr.rel (%p357) target = $region72
        $region71: #{tpu_custom_call.1} parent=51 // pred_region
          %361 = dma.done [#allocation12], 512
        $region72: #{tpu_custom_call.1} parent=51 // pred_fallthru
          _
        %s362 = sand.u32 %s35, 1
        %s363 = scalar_lea.sflag [#allocation6], %s362
        %s364 = sand.u32 %s35, 1
        %s365 = smul.addr %s364, 16
        %s366 = scalar_lea.vmem [#allocation5], %s365
        %p367 = pneg %p48
        %p368 = pneg %p45
        %p369 = pneg %p69
        %p370 = pneg %p66
        %p371 = pneg %p90
        %p372 = pneg %p87
        %p373 = pneg %p111
        %p374 = pneg %p108
        %p375 = pneg %p132
        %p376 = pneg %p129
        %p377 = pneg %p153
        %p378 = pneg %p150
        %p379 = pneg %p174
        %p380 = pneg %p171
        %p381 = pneg %p195
        %p382 = pneg %p192
        %p383 = pneg %p221
        %p384 = pneg %p218
        %s385 = sand.u32 %s208, 1
        %s386 = scalar_lea.sflag [#allocation7], %s385
        %s387 = sand.u32 %s208, 1
        %s388 = smul.addr %s387, 16
        %s389 = scalar_lea.vmem [#allocation14], %s388
        %v391 = vld [vmem:[%s336] sm:$0xff]
        %v392 = vld [vmem:[%s336 + $0x8] sm:$0xff]
        %v393 = vld [vmem:[#allocation8] sm:$0x1]
        %v394 = vld [vmem:[%s2] sm:$0x1]
        %vm395 = vcmask 523264
        %v396 = vsel %vm395, %v391, 0.0
        %397 = vadd.xlane.f32.xlu0 %v396
        %v398 = vpop.xlane.xlu0 %397
        %v399 = vsel %vm395, %v392, 0.0
        %400 = vadd.xlane.f32.xlu0 %v399
        %v401 = vpop.xlane.xlu0 %400
        %v402 = vrcp.pop 64.0
        %v403 = vmul.f32 64.0, %v402
        %v404 = vsub.f32 1.0, %v403
        %v405 = vmul.f32 %v402, %v404
        %v406 = vadd.f32 %v402, %v405
        %vm407 = vweird.f32 %v402
        %v408 = vsel %vm407, %v402, %v406
        %v409 = vmul.f32 %v398, %v408
        %v410 = vmul.f32 %v401, %v408
        %v411 = vsub.f32 %v391, %v409
        %v412 = vsub.f32 %v392, %v410
        %v413 = vmul.f32 %v411, %v411
        %v414 = vmul.f32 %v412, %v412
        %v415 = vsel %vm395, %v413, 0.0
        %416 = vadd.xlane.f32.xlu0 %v415
        %v417 = vpop.xlane.xlu0 %416
        %v418 = vsel %vm395, %v414, 0.0
        %419 = vadd.xlane.f32.xlu0 %v418
        %v420 = vpop.xlane.xlu0 %419
        %v421 = vmul.f32 %v417, %v408
        %v422 = vmul.f32 %v420, %v408
        %v423 = vadd.f32 %v421, 1e-06
        %v424 = vadd.f32 %v422, 1e-06
        %v425 = vrsqrt.pop %v423
        %v426 = vmul.f32 %v425, %v423
        %v427 = vmul.f32 %v426, %v425
        %v428 = vmul.f32 0.5, %v427
        %v429 = vsub.f32 1.5, %v428
        %v430 = vmul.f32 %v425, %v429
        %vm431 = vweird.f32 %v423
        %vm432 = vweird.f32 %v425
        %vm433 = vmor %vm431, %vm432
        %v434 = vsel %vm433, %v425, %v430
        %v435 = vrsqrt.pop %v424
        %v436 = vmul.f32 %v435, %v424
        %v437 = vmul.f32 %v436, %v435
        %v438 = vmul.f32 0.5, %v437
        %v439 = vsub.f32 1.5, %v438
        %v440 = vmul.f32 %v435, %v439
        %vm441 = vweird.f32 %v424
        %vm442 = vweird.f32 %v435
        %vm443 = vmor %vm441, %vm442
        %v444 = vsel %vm443, %v435, %v440
        %v445 = vmul.f32 %v411, %v434
        %v446 = vmul.f32 %v412, %v444
        %v448 = vperm.slane %v393, 0
        %v450 = vmul.f32 %v445, %v448
        %v451 = vmul.f32 %v446, %v448
        %v453 = vperm.slane %v394, 0
        %v455 = vadd.f32 %v450, %v453
        %v456 = vadd.f32 %v451, %v453
        %v457 = vpack.c.bf16 %v456, %v455
        %v458 = vld [vmem:[#allocation10] sm:$0xf]
        %v459 = vld [vmem:[#allocation10 + $0x4] sm:$0xf]
        %v460 = vld [vmem:[#allocation10 + $0x8] sm:$0xf]
        %v461 = vld [vmem:[#allocation10 + $0xc] sm:$0xf]
        %v462 = vld [vmem:[#allocation10 + $0x10] sm:$0xf]
        %v463 = vld [vmem:[#allocation10 + $0x14] sm:$0xf]
        %v464 = vld [vmem:[#allocation10 + $0x18] sm:$0xf]
        %v465 = vld [vmem:[#allocation10 + $0x1c] sm:$0xf]
        %v474 = vunpack.c.l.b16 %v458
        %v475 = vunpack.c.l.b16 %v459
        %v476 = vunpack.c.l.b16 %v460
        %v477 = vunpack.c.l.b16 %v461
        %v478 = vunpack.c.l.b16 %v462
        %v479 = vunpack.c.l.b16 %v463
        %v480 = vunpack.c.l.b16 %v464
        %v481 = vunpack.c.l.b16 %v465
        %v482 = vpack.c.b16 %v475, %v474
        %v483 = vpack.c.b16 %v477, %v476
        %v484 = vpack.c.b16 %v479, %v478
        %v485 = vpack.c.b16 %v481, %v480
        %v491 = vsel %vm395, %v457, 0
        %493 = vmatpush.bf16.msra.mxu0 0
        %494 = vmatpush.bf16.msra.mxu0 0
        %495 = vmatpush.bf16.msra.mxu0 0
        %496 = vmatpush.bf16.msra.mxu0 0
        %497 = vmatpush.bf16.msra.mxu0 %v485
        %498 = vmatpush.bf16.msra.mxu0 %v484
        %499 = vmatpush.bf16.msra.mxu0 %v483
        %500 = vmatpush.bf16.msra.mxu0 %v482
        %501 = vmatmul.bf16.gmra.mxu0 %v491
        %v502 = vpop.f32.mrf.mxu0
        %v503 = vadd.f32 0.0, %v502
        %v504 = vpop.f32.mrf.mxu0
        %v505 = vadd.f32 0.0, %v504
        %506 = vdwg.mxu0
        %v507 = vpack.c.bf16 %v503, %v503
        %v508 = vpack.c.bf16 %v505, %v505
        %vm509 = vcmask 519168
        %510 = vst.msk [vmem:[#allocation2] sm:$0xf] %vm509, %v507
        %511 = vst.msk [vmem:[#allocation2 + $0x4] sm:$0xf] %vm509, %v508
        %v512 = vld [vmem:[#allocation11] sm:$0xf]
        %v513 = vld [vmem:[#allocation11 + $0x4] sm:$0xf]
        %v514 = vld [vmem:[#allocation11 + $0x8] sm:$0xf]
        %v515 = vld [vmem:[#allocation11 + $0xc] sm:$0xf]
        %v516 = vld [vmem:[#allocation11 + $0x10] sm:$0xf]
        %v517 = vld [vmem:[#allocation11 + $0x14] sm:$0xf]
        %v518 = vld [vmem:[#allocation11 + $0x18] sm:$0xf]
        %v519 = vld [vmem:[#allocation11 + $0x1c] sm:$0xf]
        %v528 = vunpack.c.l.b16 %v512
        %v529 = vunpack.c.l.b16 %v513
        %v530 = vunpack.c.l.b16 %v514
        %v531 = vunpack.c.l.b16 %v515
        %v532 = vunpack.c.l.b16 %v516
        %v533 = vunpack.c.l.b16 %v517
        %v534 = vunpack.c.l.b16 %v518
        %v535 = vunpack.c.l.b16 %v519
        %v536 = vpack.c.b16 %v529, %v528
        %v537 = vpack.c.b16 %v531, %v530
        %v538 = vpack.c.b16 %v533, %v532
        %v539 = vpack.c.b16 %v535, %v534
        %544 = vmatpush.bf16.msra.mxu0 0
        %545 = vmatpush.bf16.msra.mxu0 0
        %546 = vmatpush.bf16.msra.mxu0 0
        %547 = vmatpush.bf16.msra.mxu0 0
        %548 = vmatpush.bf16.msra.mxu0 %v539
        %549 = vmatpush.bf16.msra.mxu0 %v538
        %550 = vmatpush.bf16.msra.mxu0 %v537
        %551 = vmatpush.bf16.msra.mxu0 %v536
        %552 = vmatmul.bf16.gmra.mxu0 %v491
        %v553 = vpop.f32.mrf.mxu0
        %v554 = vadd.f32 0.0, %v553
        %v555 = vpop.f32.mrf.mxu0
        %v556 = vadd.f32 0.0, %v555
        %557 = vdwg.mxu0
        %v558 = vpack.c.bf16 %v554, %v554
        %v559 = vpack.c.bf16 %v556, %v556
        %560 = vst [vmem:[#allocation3] sm:$0xf] %v558
        %561 = vst [vmem:[#allocation3 + $0x4] sm:$0xf] %v559
        %v562 = vld [vmem:[#allocation2] sm:$0xf]
        %v563 = vld [vmem:[#allocation2 + $0x4] sm:$0xf]
        %v564 = vld [vmem:[#allocation3] sm:$0xf]
        %v565 = vld [vmem:[#allocation3 + $0x4] sm:$0xf]
        %v568 = vunpack.c.l.b16 %v562
        %v569 = vunpack.c.l.b16 %v563
        %v570 = vpack.c.b16 %v569, %v568
        %v573 = vunpack.c.l.b16 %v564
        %v574 = vunpack.c.l.b16 %v565
        %v575 = vpack.c.b16 %v574, %v573
        %vm576 = vcmask 130048
        %v578 = vsel %vm576, %v570, 0
        %v581 = vsel %vm576, %v575, 0
        %583 = vmatpush.bf16.xpose.msra.mxu0 0
        %584 = vmatpush.bf16.xpose.msra.mxu0 0
        %585 = vmatpush.bf16.xpose.msra.mxu0 0
        %586 = vmatpush.bf16.xpose.msra.mxu0 0
        %587 = vmatpush.bf16.xpose.msra.mxu0 0
        %588 = vmatpush.bf16.xpose.msra.mxu0 0
        %589 = vmatpush.bf16.xpose.msra.mxu0 0
        %590 = vmatpush.bf16.xpose.msra.mxu0 %v581
        %591 = vmatmul.bf16.gmra.mxu0 %v578
        %v592 = vpop.f32.mrf.mxu0
        %v593 = vadd.f32 0.0, %v592
        %v594 = vpop.f32.mrf.mxu0
        %v595 = vadd.f32 0.0, %v594
        %596 = vdwg.mxu0
        %v597 = vsel %vm576, %v593, -inf
        %598 = vmax.xlane.f32.xlu0 %v597
        %v599 = vpop.xlane.xlu0 %598
        %v600 = vsel %vm576, %v595, -inf
        %601 = vmax.xlane.f32.xlu0 %v600
        %v602 = vpop.xlane.xlu0 %601
        %v603 = vsub.f32 %v593, %v599
        %v604 = vsub.f32 %v595, %v602
        %v605 = vmul.f32 %v603, 1.442695
        %v606 = vpow.pop %v605
        %v607 = vmul.f32 %v604, 1.442695
        %v608 = vpow.pop %v607
        %v609 = vsel %vm576, %v606, 0.0
        %610 = vadd.xlane.f32.xlu0 %v609
        %v611 = vpop.xlane.xlu0 %610
        %v612 = vsel %vm576, %v608, 0.0
        %613 = vadd.xlane.f32.xlu0 %v612
        %v614 = vpop.xlane.xlu0 %613
        %v615 = vrcp.pop %v611
        %v616 = vrcp.pop %v614
        %v617 = vmul.f32 %v606, %v615
        %v618 = vmul.f32 %v608, %v616
        %v619 = vpack.c.bf16 %v618, %v617
        %620 = vrot.lane.b32.xlu0 %v575, 64
        %v621 = vpop.permute.xlu0 %620
        %v624 = vsel %vm576, %v619, 0
        %626 = vmatpush.bf16.msra.mxu0 0
        %627 = vmatpush.bf16.msra.mxu0 0
        %628 = vmatpush.bf16.msra.mxu0 0
        %629 = vmatpush.bf16.msra.mxu0 0
        %630 = vmatpush.bf16.msra.mxu0 0
        %631 = vmatpush.bf16.msra.mxu0 0
        %632 = vmatpush.bf16.msra.mxu0 0
        %633 = vmatpush.bf16.msra.mxu0 %v621
        %634 = vmatmul.bf16.gmra.mxu0 %v624
        %v635 = vpop.f32.mrf.mxu0
        %v636 = vadd.f32 0.0, %v635
        %v637 = vpop.f32.mrf.mxu0
        %v638 = vadd.f32 0.0, %v637
        %639 = vdwg.mxu0
        %v640 = vpack.c.bf16 %v636, %v636
        %v641 = vpack.c.bf16 %v638, %v638
        %vm642 = vcmask 125952
        %643 = vst.msk [vmem:[#allocation4] sm:$0xf] %vm642, %v640
        %644 = vst.msk [vmem:[#allocation4 + $0x4] sm:$0xf] %vm642, %v641
        %v645 = vld [vmem:[#allocation2] sm:$0xf]
        %v646 = vld [vmem:[#allocation2 + $0x4] sm:$0xf]
        %v647 = vld [vmem:[#allocation3] sm:$0xf]
        %v648 = vld [vmem:[#allocation3 + $0x4] sm:$0xf]
        %v651 = vunpack.c.l.b16 %v645
        %v652 = vunpack.c.l.b16 %v646
        %v653 = vpack.c.b16 %v652, %v651
        %654 = vrot.lane.b32.xlu0 %v653, 112
        %v655 = vpop.permute.xlu0 %654
        %v658 = vunpack.c.l.b16 %v647
        %v659 = vunpack.c.l.b16 %v648
        %v660 = vpack.c.b16 %v659, %v658
        %661 = vrot.lane.b32.xlu0 %v660, 112
        %v662 = vpop.permute.xlu0 %661
        %v664 = vsel %vm576, %v655, 0
        %v667 = vsel %vm576, %v662, 0
        %669 = vmatpush.bf16.xpose.msra.mxu0 0
        %670 = vmatpush.bf16.xpose.msra.mxu0 0
        %671 = vmatpush.bf16.xpose.msra.mxu0 0
        %672 = vmatpush.bf16.xpose.msra.mxu0 0
        %673 = vmatpush.bf16.xpose.msra.mxu0 0
        %674 = vmatpush.bf16.xpose.msra.mxu0 0
        %675 = vmatpush.bf16.xpose.msra.mxu0 0
        %676 = vmatpush.bf16.xpose.msra.mxu0 %v667
        %677 = vmatmul.bf16.gmra.mxu0 %v664
        %v678 = vpop.f32.mrf.mxu0
        %v679 = vadd.f32 0.0, %v678
        %v680 = vpop.f32.mrf.mxu0
        %v681 = vadd.f32 0.0, %v680
        %682 = vdwg.mxu0
        %v683 = vsel %vm576, %v679, -inf
        %684 = vmax.xlane.f32.xlu0 %v683
        %v685 = vpop.xlane.xlu0 %684
        %v686 = vsel %vm576, %v681, -inf
        %687 = vmax.xlane.f32.xlu0 %v686
        %v688 = vpop.xlane.xlu0 %687
        %v689 = vsub.f32 %v679, %v685
        %v690 = vsub.f32 %v681, %v688
        %v691 = vmul.f32 %v689, 1.442695
        %v692 = vpow.pop %v691
        %v693 = vmul.f32 %v690, 1.442695
        %v694 = vpow.pop %v693
        %v695 = vsel %vm576, %v692, 0.0
        %696 = vadd.xlane.f32.xlu0 %v695
        %v697 = vpop.xlane.xlu0 %696
        %v698 = vsel %vm576, %v694, 0.0
        %699 = vadd.xlane.f32.xlu0 %v698
        %v700 = vpop.xlane.xlu0 %699
        %v701 = vrcp.pop %v697
        %v702 = vrcp.pop %v700
        %v703 = vmul.f32 %v692, %v701
        %v704 = vmul.f32 %v694, %v702
        %v705 = vpack.c.bf16 %v704, %v703
        %706 = vrot.lane.b32.xlu0 %v660, 48
        %v707 = vpop.permute.xlu0 %706
        %v710 = vsel %vm576, %v705, 0
        %712 = vmatpush.bf16.msra.mxu0 0
        %713 = vmatpush.bf16.msra.mxu0 0
        %714 = vmatpush.bf16.msra.mxu0 0
        %715 = vmatpush.bf16.msra.mxu0 0
        %716 = vmatpush.bf16.msra.mxu0 0
        %717 = vmatpush.bf16.msra.mxu0 0
        %718 = vmatpush.bf16.msra.mxu0 0
        %719 = vmatpush.bf16.msra.mxu0 %v707
        %720 = vmatmul.bf16.gmra.mxu0 %v710
        %v721 = vpop.f32.mrf.mxu0
        %v722 = vadd.f32 0.0, %v721
        %v723 = vpop.f32.mrf.mxu0
        %v724 = vadd.f32 0.0, %v723
        %725 = vdwg.mxu0
        %v726 = vpack.c.bf16 %v722, %v722
        %v727 = vpack.c.bf16 %v724, %v724
        %730 = vrot.lane.b32.xlu0 %v726, 16
        %v731 = vpop.permute.xlu0 %730
        %732 = vrot.lane.b32.xlu0 %v727, 16
        %v733 = vpop.permute.xlu0 %732
        %vm736 = vcmask 257152
        %737 = vst.msk [vmem:[#allocation4] sm:$0xf] %vm736, %v731
        %738 = vst.msk [vmem:[#allocation4 + $0x4] sm:$0xf] %vm736, %v733
        %v739 = vld [vmem:[#allocation2] sm:$0xf]
        %v740 = vld [vmem:[#allocation2 + $0x4] sm:$0xf]
        %v741 = vld [vmem:[#allocation3] sm:$0xf]
        %v742 = vld [vmem:[#allocation3 + $0x4] sm:$0xf]
        %v745 = vunpack.c.l.b16 %v739
        %v746 = vunpack.c.l.b16 %v740
        %v747 = vpack.c.b16 %v746, %v745
        %748 = vrot.lane.b32.xlu0 %v747, 96
        %v749 = vpop.permute.xlu0 %748
        %v752 = vunpack.c.l.b16 %v741
        %v753 = vunpack.c.l.b16 %v742
        %v754 = vpack.c.b16 %v753, %v752
        %755 = vrot.lane.b32.xlu0 %v754, 96
        %v756 = vpop.permute.xlu0 %755
        %v758 = vsel %vm576, %v749, 0
        %v761 = vsel %vm576, %v756, 0
        %763 = vmatpush.bf16.xpose.msra.mxu0 0
        %764 = vmatpush.bf16.xpose.msra.mxu0 0
        %765 = vmatpush.bf16.xpose.msra.mxu0 0
        %766 = vmatpush.bf16.xpose.msra.mxu0 0
        %767 = vmatpush.bf16.xpose.msra.mxu0 0
        %768 = vmatpush.bf16.xpose.msra.mxu0 0
        %769 = vmatpush.bf16.xpose.msra.mxu0 0
        %770 = vmatpush.bf16.xpose.msra.mxu0 %v761
        %771 = vmatmul.bf16.gmra.mxu0 %v758
        %v772 = vpop.f32.mrf.mxu0
        %v773 = vadd.f32 0.0, %v772
        %v774 = vpop.f32.mrf.mxu0
        %v775 = vadd.f32 0.0, %v774
        %776 = vdwg.mxu0
        %v777 = vsel %vm576, %v773, -inf
        %778 = vmax.xlane.f32.xlu0 %v777
        %v779 = vpop.xlane.xlu0 %778
        %v780 = vsel %vm576, %v775, -inf
        %781 = vmax.xlane.f32.xlu0 %v780
        %v782 = vpop.xlane.xlu0 %781
        %v783 = vsub.f32 %v773, %v779
        %v784 = vsub.f32 %v775, %v782
        %v785 = vmul.f32 %v783, 1.442695
        %v786 = vpow.pop %v785
        %v787 = vmul.f32 %v784, 1.442695
        %v788 = vpow.pop %v787
        %v789 = vsel %vm576, %v786, 0.0
        %790 = vadd.xlane.f32.xlu0 %v789
        %v791 = vpop.xlane.xlu0 %790
        %v792 = vsel %vm576, %v788, 0.0
        %793 = vadd.xlane.f32.xlu0 %v792
        %v794 = vpop.xlane.xlu0 %793
        %v795 = vrcp.pop %v791
        %v796 = vrcp.pop %v794
        %v797 = vmul.f32 %v786, %v795
        %v798 = vmul.f32 %v788, %v796
        %v799 = vpack.c.bf16 %v798, %v797
        %800 = vrot.lane.b32.xlu0 %v754, 32
        %v801 = vpop.permute.xlu0 %800
        %v804 = vsel %vm576, %v799, 0
        %806 = vmatpush.bf16.msra.mxu0 0
        %807 = vmatpush.bf16.msra.mxu0 0
        %808 = vmatpush.bf16.msra.mxu0 0
        %809 = vmatpush.bf16.msra.mxu0 0
        %810 = vmatpush.bf16.msra.mxu0 0
        %811 = vmatpush.bf16.msra.mxu0 0
        %812 = vmatpush.bf16.msra.mxu0 0
        %813 = vmatpush.bf16.msra.mxu0 %v801
        %814 = vmatmul.bf16.gmra.mxu0 %v804
        %v815 = vpop.f32.mrf.mxu0
        %v816 = vadd.f32 0.0, %v815
        %v817 = vpop.f32.mrf.mxu0
        %v818 = vadd.f32 0.0, %v817
        %819 = vdwg.mxu0
        %v820 = vpack.c.bf16 %v816, %v816
        %v821 = vpack.c.bf16 %v818, %v818
        %824 = vrot.lane.b32.xlu0 %v820, 32
        %v825 = vpop.permute.xlu0 %824
        %826 = vrot.lane.b32.xlu0 %v821, 32
        %v827 = vpop.permute.xlu0 %826
        %vm830 = vcmask 388352
        %831 = vst.msk [vmem:[#allocation4] sm:$0xf] %vm830, %v825
        %832 = vst.msk [vmem:[#allocation4 + $0x4] sm:$0xf] %vm830, %v827
        %v833 = vld [vmem:[#allocation2] sm:$0xf]
        %v834 = vld [vmem:[#allocation2 + $0x4] sm:$0xf]
        %v835 = vld [vmem:[#allocation3] sm:$0xf]
        %v836 = vld [vmem:[#allocation3 + $0x4] sm:$0xf]
        %v839 = vunpack.c.l.b16 %v833
        %v840 = vunpack.c.l.b16 %v834
        %v841 = vpack.c.b16 %v840, %v839
        %842 = vrot.lane.b32.xlu0 %v841, 80
        %v843 = vpop.permute.xlu0 %842
        %v846 = vunpack.c.l.b16 %v835
        %v847 = vunpack.c.l.b16 %v836
        %v848 = vpack.c.b16 %v847, %v846
        %849 = vrot.lane.b32.xlu0 %v848, 80
        %v850 = vpop.permute.xlu0 %849
        %v852 = vsel %vm576, %v843, 0
        %v855 = vsel %vm576, %v850, 0
        %857 = vmatpush.bf16.xpose.msra.mxu0 0
        %858 = vmatpush.bf16.xpose.msra.mxu0 0
        %859 = vmatpush.bf16.xpose.msra.mxu0 0
        %860 = vmatpush.bf16.xpose.msra.mxu0 0
        %861 = vmatpush.bf16.xpose.msra.mxu0 0
        %862 = vmatpush.bf16.xpose.msra.mxu0 0
        %863 = vmatpush.bf16.xpose.msra.mxu0 0
        %864 = vmatpush.bf16.xpose.msra.mxu0 %v855
        %865 = vmatmul.bf16.gmra.mxu0 %v852
        %v866 = vpop.f32.mrf.mxu0
        %v867 = vadd.f32 0.0, %v866
        %v868 = vpop.f32.mrf.mxu0
        %v869 = vadd.f32 0.0, %v868
        %870 = vdwg.mxu0
        %v871 = vsel %vm576, %v867, -inf
        %872 = vmax.xlane.f32.xlu0 %v871
        %v873 = vpop.xlane.xlu0 %872
        %v874 = vsel %vm576, %v869, -inf
        %875 = vmax.xlane.f32.xlu0 %v874
        %v876 = vpop.xlane.xlu0 %875
        %v877 = vsub.f32 %v867, %v873
        %v878 = vsub.f32 %v869, %v876
        %v879 = vmul.f32 %v877, 1.442695
        %v880 = vpow.pop %v879
        %v881 = vmul.f32 %v878, 1.442695
        %v882 = vpow.pop %v881
        %v883 = vsel %vm576, %v880, 0.0
        %884 = vadd.xlane.f32.xlu0 %v883
        %v885 = vpop.xlane.xlu0 %884
        %v886 = vsel %vm576, %v882, 0.0
        %887 = vadd.xlane.f32.xlu0 %v886
        %v888 = vpop.xlane.xlu0 %887
        %v889 = vrcp.pop %v885
        %v890 = vrcp.pop %v888
        %v891 = vmul.f32 %v880, %v889
        %v892 = vmul.f32 %v882, %v890
        %v893 = vpack.c.bf16 %v892, %v891
        %894 = vrot.lane.b32.xlu0 %v848, 16
        %v895 = vpop.permute.xlu0 %894
        %v898 = vsel %vm576, %v893, 0
        %900 = vmatpush.bf16.msra.mxu0 0
        %901 = vmatpush.bf16.msra.mxu0 0
        %902 = vmatpush.bf16.msra.mxu0 0
        %903 = vmatpush.bf16.msra.mxu0 0
        %904 = vmatpush.bf16.msra.mxu0 0
        %905 = vmatpush.bf16.msra.mxu0 0
        %906 = vmatpush.bf16.msra.mxu0 0
        %907 = vmatpush.bf16.msra.mxu0 %v895
        %908 = vmatmul.bf16.gmra.mxu0 %v898
        %v909 = vpop.f32.mrf.mxu0
        %v910 = vadd.f32 0.0, %v909
        %v911 = vpop.f32.mrf.mxu0
        %v912 = vadd.f32 0.0, %v911
        %913 = vdwg.mxu0
        %v914 = vpack.c.bf16 %v910, %v910
        %v915 = vpack.c.bf16 %v912, %v912
        %918 = vrot.lane.b32.xlu0 %v914, 48
        %v919 = vpop.permute.xlu0 %918
        %920 = vrot.lane.b32.xlu0 %v915, 48
        %v921 = vpop.permute.xlu0 %920
        %vm924 = vcmask 519552
        %925 = vst.msk [vmem:[#allocation4] sm:$0xf] %vm924, %v919
        %926 = vst.msk [vmem:[#allocation4 + $0x4] sm:$0xf] %vm924, %v921
        %v927 = vld [vmem:[#allocation4] sm:$0xf]
        %v928 = vld [vmem:[#allocation4 + $0x4] sm:$0xf]
        %v929 = vld [vmem:[#allocation13] sm:$0xf]
        %v930 = vld [vmem:[#allocation13 + $0x4] sm:$0xf]
        %v931 = vld [vmem:[#allocation13 + $0x8] sm:$0xf]
        %v932 = vld [vmem:[#allocation13 + $0xc] sm:$0xf]
        %v933 = vld [vmem:[#allocation13 + $0x10] sm:$0xf]
        %v934 = vld [vmem:[#allocation13 + $0x14] sm:$0xf]
        %v935 = vld [vmem:[#allocation13 + $0x18] sm:$0xf]
        %v936 = vld [vmem:[#allocation13 + $0x1c] sm:$0xf]
        %v937 = vld [vmem:[%s6] sm:$0x1]
        %v939 = vperm.slane %v937, 0
        %v943 = vunpack.c.l.b16 %v927
        %v944 = vunpack.c.l.b16 %v928
        %v945 = vpack.c.b16 %v944, %v943
        %v954 = vunpack.c.l.b16 %v929
        %v955 = vunpack.c.l.b16 %v930
        %v956 = vunpack.c.l.b16 %v931
        %v957 = vunpack.c.l.b16 %v932
        %v958 = vunpack.c.l.b16 %v933
        %v959 = vunpack.c.l.b16 %v934
        %v960 = vunpack.c.l.b16 %v935
        %v961 = vunpack.c.l.b16 %v936
        %v962 = vpack.c.b16 %v955, %v954
        %v963 = vpack.c.b16 %v957, %v956
        %v964 = vpack.c.b16 %v959, %v958
        %v965 = vpack.c.b16 %v961, %v960
        %v971 = vsel %vm395, %v945, 0
        %973 = vmatpush.bf16.msra.mxu0 0
        %974 = vmatpush.bf16.msra.mxu0 0
        %975 = vmatpush.bf16.msra.mxu0 0
        %976 = vmatpush.bf16.msra.mxu0 0
        %977 = vmatpush.bf16.msra.mxu0 %v965
        %978 = vmatpush.bf16.msra.mxu0 %v964
        %979 = vmatpush.bf16.msra.mxu0 %v963
        %980 = vmatpush.bf16.msra.mxu0 %v962
        %981 = vmatmul.bf16.gmra.mxu0 %v971
        %v982 = vpop.f32.mrf.mxu0
        %v983 = vadd.f32 %v939, %v982
        %v984 = vpop.f32.mrf.mxu0
        %v985 = vadd.f32 %v939, %v984
        %986 = vdwg.mxu0
        %v987 = vld [vmem:[%s7] sm:$0x1]
        %v989 = vperm.slane %v987, 0
        %v991 = vmul.f32 %v983, %v989
        %v992 = vmul.f32 %v985, %v989
        %v993 = vadd.f32 %v391, %v991
        %v994 = vadd.f32 %v392, %v992
        %995 = vst.msk [vmem:[%s389] sm:$0xff] %vm395, %v993
        %996 = vst.msk [vmem:[%s389 + $0x8] sm:$0xff] %vm395, %v994
        %s997 = sand.u32 %s208, 1
        %s998 = scalar_lea.sflag [#allocation7], %s997
        %s999 = sand.u32 %s208, 1
        %s1000 = smul.addr %s999, 16
        %s1001 = scalar_lea.vmem [#allocation14], %s1000
        // Predicated region
        $region73: #{tpu_custom_call.1} parent=51 // pred_check
          %p1002 = pneg %p218
        $region74: #{tpu_custom_call.1} parent=51 // pred_check_branch
          %1004 = sbr.rel (%p1002) target = $region76
        $region75: #{tpu_custom_call.1} parent=51 // pred_region
          %1006 = vsyncadd %s998, 0
          %s1007 = smul.addr %s27, 2
          %s1008 = smul.addr %s1007, 8
          %s1009 = scalar_lea.hbm %s8, %s1008
          %s1010 = sshll.u32 %s1001, 4
          %s1011 = int_to_ptr.vmem [resolvable:$true] %s1010
          %s1012 = sshll.u32 %s1009, 4
          %s1013 = int_to_ptr.hbm [resolvable:$true] %s1012
          %1018 = dma.vmem_to_hbm [thread:$0]  %s1011, 256, %s1013, %s998, 128, 128, 8
        $region76: #{tpu_custom_call.1} parent=51 // pred_fallthru
          _
      $region52: #{tpu_custom_call.1} parent=5 // pred_fallthru
        _
      %p1019 = scmp.le.s32.totalorder 2, %s22
      // Predicated region
      $region77: #{tpu_custom_call.1} parent=5 // pred_check
        %p1020 = pneg %p1019
      $region78: #{tpu_custom_call.1} parent=5 // pred_check_branch
        %1022 = sbr.rel (%p1020) target = $region80
      $region79: #{tpu_custom_call.1} parent=5 // pred_region
        %s1023 = ssub.s32 %s22, 2
        // Predicated region
        $region81: #{tpu_custom_call.1} parent=79 // pred_check
          %p1024 = pneg %p224
        $region82: #{tpu_custom_call.1} parent=79 // pred_check_branch
          %1026 = sbr.rel (%p1024) target = $region84
        $region83: #{tpu_custom_call.1} parent=79 // pred_region
          %s1027 = sand.u32 %s209, 1
          %s1028 = scalar_lea.sflag [#allocation7], %s1027
          %s1029 = sand.u32 %s209, 1
          %s1030 = smul.addr %s1029, 16
          %s1031 = scalar_lea.vmem [#allocation14], %s1030
          %1033 = dma.done %s1028, 256
        $region84: #{tpu_custom_call.1} parent=79 // pred_fallthru
          _
      $region80: #{tpu_custom_call.1} parent=5 // pred_fallthru
        _
    $region6: #{tpu_custom_call.1} parent=1 // loop_footer
      %s26 = sadd.s32 1, %s22
    $region7: #{tpu_custom_call.1} parent=1 // loop_footer_branch
      %21 = sbr.rel target = $region3
    $region8: #{tpu_custom_call.1} parent=1 // loop_exit
      _
    %1034 = vsyncpa [#allocation6], 1
    %s1035 = scalar_lea.sflag [#allocation6], 1
    %1036 = vsyncpa %s1035, 1
    %1037 = vsyncpa [#allocation9], 1
    %1038 = vsyncpa [#allocation12], 1
    %1039 = vsyncpa [#allocation7], 1
    %s1040 = scalar_lea.sflag [#allocation7], 1
    %1041 = vsyncpa %s1040, 1

</llo_original>
